<compile_context>
chip_gen: v6e
topology: v6e:2x2x1
jax: 0.10.0
libtpu: 0.0.40
codegen_flags: <defaults>
</compile_context>

<pallas_src>
import jax
import jax.numpy as jnp
from jax.experimental import pallas as pl
from jax.experimental.pallas import tpu as pltpu


def _mlp_kernel(x_ref,
                w0, b0, w1, b1, w2, b2, w3, b3, w4, b4, w5, b5,
                o_ref):
    """Entire MLP forward for one batch tile, fused in VMEM."""
    f32 = jnp.float32

    def dense(h, w_ref, b_ref):
        w = w_ref[...]
        # Cast the activation to the weight dtype (no-op in f32 mode, bf16 in
        # the optional bf16 mode); accumulate in f32 on the MXU.
        return jnp.dot(h.astype(w.dtype), w, preferred_element_type=f32) + b_ref[...]

    h = jnp.maximum(dense(x_ref[...], w0, b0), 0.0)   # embed + ReLU
    h = jnp.maximum(dense(h, w1, b1), 0.0)            # e -> e
    h = jnp.maximum(dense(h, w2, b2), 0.0)            # e -> e
    h = jnp.maximum(dense(h, w3, b3), 0.0)            # e -> 256
    h = jnp.maximum(dense(h, w4, b4), 0.0)            # 256 -> 128
    o_ref[...] = dense(h, w5, b5).astype(o_ref.dtype) # head (no ReLU)


def _round_up(a, m):
    return (a + m - 1) // m * m


def _vmem_capacity_bytes():
    """Per-TensorCore VMEM capacity; conservative fallback if unavailable."""
    try:
        info = pltpu.get_tpu_info()
        cap = getattr(info, "vmem_capacity_bytes", None)
        if cap:
            return int(cap)
    except Exception:
        pass
    return 64 << 20  # v7x per-core VMEM (smallest of the three generations)


def _is_megacore():
    """True for devices with 2 TensorCores behind one device (v4/v5p, v7x)."""
    try:
        kind = jax.devices()[0].device_kind.lower()
    except Exception:
        return False
    return any(tag in kind for tag in ("v4", "v5p", "v7", "7x"))


def _vmem_need_bytes(tile, in_dim, embed_dim, out_dim, param_bytes, in_itemsize):
    lane = 128
    x_buf = 2 * tile * max(_round_up(in_dim, lane), lane) * in_itemsize   # 2x in
    o_buf = 2 * tile * max(_round_up(out_dim, lane), lane) * 4            # 2x out
    w_buf = 2 * param_bytes                                               # 2x weights
    act = 3 * tile * max(_round_up(embed_dim, lane), 256) * 4             # live acts
    return x_buf + o_buf + w_buf + act


def baseline_forward(x, params, *, batch_tile=None, use_bf16=False):
    """params = (w0,b0,...,w5,b5); weights are (in,out) (torch W.T), biases (1,out)."""
    B, in_dim = x.shape
    embed_dim = params[0].shape[1]
    out_dim = params[-2].shape[-1]

    if use_bf16:
        # bf16 inputs/weights, f32 biases + accumulation (v6e/v7x MXU fast path).
        x = x.astype(jnp.bfloat16)
        params = tuple((p.astype(jnp.bfloat16) if i % 2 == 0 else p)
                       for i, p in enumerate(params))

    param_bytes = sum(int(p.size) * p.dtype.itemsize for p in params)
    in_itemsize = x.dtype.itemsize

    # ---- VMEM-aware batch-tile selection + explicit scoped-VMEM limit.
    vmem_cap = _vmem_capacity_bytes()
    budget = min(int(vmem_cap * 0.6), vmem_cap - (16 << 20))
    budget = max(budget, 16 << 20)

    cap_rows = max(128, _round_up(B, 128))
    if batch_tile is not None:
        tile = min(max(128, _round_up(batch_tile, 128)), cap_rows)
    else:
        tile = 128
        for cand in (2048, 1024, 512, 256, 128):
            if cand <= cap_rows and _vmem_need_bytes(
                    cand, in_dim, embed_dim, out_dim, param_bytes,
                    in_itemsize) <= budget:
                tile = cand
                break

    steps = pl.cdiv(B, tile)
    # Only on 2-TensorCore devices (v7x / v4-class megacore): make sure there
    # are >=2 grid steps so dimension_semantics=("parallel",) shards the batch.
    if _is_megacore() and steps == 1 and tile >= 256:
        tile //= 2
        steps = pl.cdiv(B, tile)
    grid = (steps,)

    # x tiled over the batch; Pallas masks the partial last block (no wrapper
    # padding, no wasted rows of compute beyond the last tile's remainder).
    in_specs = [pl.BlockSpec((tile, in_dim), lambda i: (i, 0))]
    for p in params:
        # Constant index_map: each weight/bias is fetched once and stays
        # resident in VMEM across the grid.
        # TODO(synk): for very large embed_dim on v7x, single-buffer these
        # (pipeline_mode=pl.Buffered(1)) or DMA once into scratch to halve the
        # weight VMEM footprint.
        in_specs.append(pl.BlockSpec(p.shape, lambda i: (0, 0)))
    # Unpadded, full-extent-last-dim output block: no wrapper slice kernel.
    out_spec = pl.BlockSpec((tile, out_dim), lambda i: (i, 0))

    # Advisory cost estimate (real rows/columns only).
    flops = 2 * B * (in_dim * embed_dim + 2 * embed_dim * embed_dim
                     + embed_dim * 256 + 256 * 128 + 128 * out_dim)
    bytes_accessed = (int(x.size) * in_itemsize + param_bytes + B * out_dim * 4)
    cost = pl.CostEstimate(flops=flops, transcendentals=0,
                           bytes_accessed=bytes_accessed)

    return pl.pallas_call(
        _mlp_kernel,
        out_shape=jax.ShapeDtypeStruct((B, out_dim), jnp.float32),
        grid_spec=pltpu.PrefetchScalarGridSpec(
            num_scalar_prefetch=0,
            grid=grid,
            in_specs=in_specs,
            out_specs=out_spec,
        ),
        compiler_params=pltpu.CompilerParams(
            dimension_semantics=("parallel",),
            vmem_limit_bytes=int(budget)),
        cost_estimate=cost,
    )(x, *params)


def init_params(key, in_dim, embed_dim, out_dim):
    """Deterministic synthetic parameter init (same shapes as the torch module).
    Weights stored transposed relative to torch: (in_features, out_features)."""
    dims = [(in_dim, embed_dim),      # embed
            (embed_dim, embed_dim),   # layers[1]
            (embed_dim, embed_dim),   # layers[3]
            (embed_dim, 256),         # layers[5]
            (256, 128),               # layers[7]
            (128, out_dim)]           # head
    params = []
    for li, (fan_in, fan_out) in enumerate(dims):
        kw = jax.random.fold_in(key, 2 * li)
        kb = jax.random.fold_in(key, 2 * li + 1)
        scale = 1.0 / jnp.sqrt(jnp.float32(fan_in))
        w = jax.random.uniform(kw, (fan_in, fan_out), jnp.float32,
                               minval=-scale, maxval=scale)
        b = jax.random.uniform(kb, (1, fan_out), jnp.float32,
                               minval=-scale, maxval=scale)
        params += [w, b]
    return tuple(params)


def baseline_reference(x, params):
    """Pure-JAX reference matching the torch forward."""
    w0, b0, w1, b1, w2, b2, w3, b3, w4, b4, w5, b5 = params
    h = jnp.maximum(x @ w0 + b0, 0.0)
    h = jnp.maximum(h @ w1 + b1, 0.0)
    h = jnp.maximum(h @ w2 + b2, 0.0)
    h = jnp.maximum(h @ w3 + b3, 0.0)
    h = jnp.maximum(h @ w4 + b4, 0.0)
    return h @ w5 + b5


if __name__ == "__main__":
    in_dim, embed_dim, out_dim = 32, 64, 16

    key = jax.random.PRNGKey(0)
    kx, kp, kx2 = jax.random.split(key, 3)
    params = init_params(kp, in_dim, embed_dim, out_dim)

    # Case 1: small batch -> single partial 128-row tile, no wrapper padding.
    batch = 16
    x = jax.random.normal(kx, (batch, in_dim), jnp.float32)
    out = jax.block_until_ready(baseline_forward(x, params))
    ref = baseline_reference(x, params)
    assert out.shape == (batch, out_dim)
    assert jnp.allclose(out, ref, atol=1e-4, rtol=1e-4), "mismatch vs reference"

    # Case 2: non-multiple batch, multi-step grid with a masked partial tail
    # (exercises pl.cdiv grid + partial last block, no padding / no slice).
    batch2 = 272
    x2 = jax.random.normal(kx2, (batch2, in_dim), jnp.float32)
    out2 = jax.block_until_ready(baseline_forward(x2, params, batch_tile=128))
    ref2 = baseline_reference(x2, params)
    assert out2.shape == (batch2, out_dim)
    assert jnp.allclose(out2, ref2, atol=1e-4, rtol=1e-4), "mismatch vs reference"

    # Case 3: optional bf16 MXU path (v6e/v7x); f32 accumulation, loose tol.
    out3 = jax.block_until_ready(baseline_forward(x2, params, use_bf16=True))
    assert out3.shape == (batch2, out_dim)
    assert jnp.allclose(out3, ref2, atol=5e-2, rtol=5e-2), "bf16 path mismatch"

    print("KERNEL_OK")
</pallas_src>

<mosaic_0001>
module attributes {stable_mosaic.version = 11 : i64} {
  func.func @_mlp_kernel(%arg0: i32, %arg1: memref<128x32xf32, #tpu.memory_space<vmem>>, %arg2: memref<32x64xf32, #tpu.memory_space<vmem>>, %arg3: memref<1x64xf32, #tpu.memory_space<vmem>>, %arg4: memref<64x64xf32, #tpu.memory_space<vmem>>, %arg5: memref<1x64xf32, #tpu.memory_space<vmem>>, %arg6: memref<64x64xf32, #tpu.memory_space<vmem>>, %arg7: memref<1x64xf32, #tpu.memory_space<vmem>>, %arg8: memref<64x256xf32, #tpu.memory_space<vmem>>, %arg9: memref<1x256xf32, #tpu.memory_space<vmem>>, %arg10: memref<256x128xf32, #tpu.memory_space<vmem>>, %arg11: memref<1x128xf32, #tpu.memory_space<vmem>>, %arg12: memref<128x16xf32, #tpu.memory_space<vmem>>, %arg13: memref<1x16xf32, #tpu.memory_space<vmem>>, %arg14: memref<128x16xf32, #tpu.memory_space<vmem>>) attributes {dimension_semantics = [#tpu.dimension_semantics<parallel>], iteration_bounds = array<i64: 1>, scalar_prefetch = 0 : i64, scratch_operands = 0 : i64, tpu.core_type = #tpu.core_type<tc>, window_params = [{transform_indices = @transform_0, window_bounds = array<i64: 128, 32>}, {pipeline_mode = #tpu.pipeline_mode<synchronous>, transform_indices = @transform_1, window_bounds = array<i64: 32, 64>}, {pipeline_mode = #tpu.pipeline_mode<synchronous>, transform_indices = @transform_2, window_bounds = array<i64: 1, 64>}, {pipeline_mode = #tpu.pipeline_mode<synchronous>, transform_indices = @transform_3, window_bounds = array<i64: 64, 64>}, {pipeline_mode = #tpu.pipeline_mode<synchronous>, transform_indices = @transform_4, window_bounds = array<i64: 1, 64>}, {pipeline_mode = #tpu.pipeline_mode<synchronous>, transform_indices = @transform_5, window_bounds = array<i64: 64, 64>}, {pipeline_mode = #tpu.pipeline_mode<synchronous>, transform_indices = @transform_6, window_bounds = array<i64: 1, 64>}, {pipeline_mode = #tpu.pipeline_mode<synchronous>, transform_indices = @transform_7, window_bounds = array<i64: 64, 256>}, {pipeline_mode = #tpu.pipeline_mode<synchronous>, transform_indices = @transform_8, window_bounds = array<i64: 1, 256>}, {pipeline_mode = #tpu.pipeline_mode<synchronous>, transform_indices = @transform_9, window_bounds = array<i64: 256, 128>}, {pipeline_mode = #tpu.pipeline_mode<synchronous>, transform_indices = @transform_10, window_bounds = array<i64: 1, 128>}, {pipeline_mode = #tpu.pipeline_mode<synchronous>, transform_indices = @transform_11, window_bounds = array<i64: 128, 16>}, {pipeline_mode = #tpu.pipeline_mode<synchronous>, transform_indices = @transform_12, window_bounds = array<i64: 1, 16>}, {transform_indices = @transform_13, window_bounds = array<i64: 128, 16>}]} {
    %c0 = arith.constant 0 : index
    %c0_0 = arith.constant 0 : index
    %0 = vector.load %arg1[%c0, %c0_0] : memref<128x32xf32, #tpu.memory_space<vmem>>, vector<128x32xf32>
    %c0_1 = arith.constant 0 : index
    %c0_2 = arith.constant 0 : index
    %1 = vector.load %arg2[%c0_1, %c0_2] : memref<32x64xf32, #tpu.memory_space<vmem>>, vector<32x64xf32>
    %cst = arith.constant dense<0.000000e+00> : vector<128x64xf32>
    %2 = tpu.matmul %0, %1, %cst {dimension_numbers = #tpu.dot_dimension_numbers<[1], [0], [0], [1], [0, 0, 1, 1], [], []>} : vector<128x32xf32>, vector<32x64xf32>, vector<128x64xf32> -> vector<128x64xf32>
    %c0_3 = arith.constant 0 : index
    %c0_4 = arith.constant 0 : index
    %3 = vector.load %arg3[%c0_3, %c0_4] : memref<1x64xf32, #tpu.memory_space<vmem>>, vector<1x64xf32>
    %4 = vector.broadcast %3 : vector<1x64xf32> to vector<128x64xf32>
    %5 = arith.addf %2, %4 : vector<128x64xf32>
    %cst_5 = arith.constant 0.000000e+00 : f32
    %6 = vector.broadcast %cst_5 : f32 to vector<128x64xf32>
    %7 = arith.maximumf %5, %6 : vector<128x64xf32>
    %c0_6 = arith.constant 0 : index
    %c0_7 = arith.constant 0 : index
    %8 = vector.load %arg4[%c0_6, %c0_7] : memref<64x64xf32, #tpu.memory_space<vmem>>, vector<64x64xf32>
    %cst_8 = arith.constant dense<0.000000e+00> : vector<128x64xf32>
    %9 = tpu.matmul %7, %8, %cst_8 {dimension_numbers = #tpu.dot_dimension_numbers<[1], [0], [0], [1], [0, 0, 1, 1], [], []>} : vector<128x64xf32>, vector<64x64xf32>, vector<128x64xf32> -> vector<128x64xf32>
    %c0_9 = arith.constant 0 : index
    %c0_10 = arith.constant 0 : index
    %10 = vector.load %arg5[%c0_9, %c0_10] : memref<1x64xf32, #tpu.memory_space<vmem>>, vector<1x64xf32>
    %11 = vector.broadcast %10 : vector<1x64xf32> to vector<128x64xf32>
    %12 = arith.addf %9, %11 : vector<128x64xf32>
    %cst_11 = arith.constant 0.000000e+00 : f32
    %13 = vector.broadcast %cst_11 : f32 to vector<128x64xf32>
    %14 = arith.maximumf %12, %13 : vector<128x64xf32>
    %c0_12 = arith.constant 0 : index
    %c0_13 = arith.constant 0 : index
    %15 = vector.load %arg6[%c0_12, %c0_13] : memref<64x64xf32, #tpu.memory_space<vmem>>, vector<64x64xf32>
    %cst_14 = arith.constant dense<0.000000e+00> : vector<128x64xf32>
    %16 = tpu.matmul %14, %15, %cst_14 {dimension_numbers = #tpu.dot_dimension_numbers<[1], [0], [0], [1], [0, 0, 1, 1], [], []>} : vector<128x64xf32>, vector<64x64xf32>, vector<128x64xf32> -> vector<128x64xf32>
    %c0_15 = arith.constant 0 : index
    %c0_16 = arith.constant 0 : index
    %17 = vector.load %arg7[%c0_15, %c0_16] : memref<1x64xf32, #tpu.memory_space<vmem>>, vector<1x64xf32>
    %18 = vector.broadcast %17 : vector<1x64xf32> to vector<128x64xf32>
    %19 = arith.addf %16, %18 : vector<128x64xf32>
    %cst_17 = arith.constant 0.000000e+00 : f32
    %20 = vector.broadcast %cst_17 : f32 to vector<128x64xf32>
    %21 = arith.maximumf %19, %20 : vector<128x64xf32>
    %c0_18 = arith.constant 0 : index
    %c0_19 = arith.constant 0 : index
    %22 = vector.load %arg8[%c0_18, %c0_19] : memref<64x256xf32, #tpu.memory_space<vmem>>, vector<64x256xf32>
    %cst_20 = arith.constant dense<0.000000e+00> : vector<128x256xf32>
    %23 = tpu.matmul %21, %22, %cst_20 {dimension_numbers = #tpu.dot_dimension_numbers<[1], [0], [0], [1], [0, 0, 1, 1], [], []>} : vector<128x64xf32>, vector<64x256xf32>, vector<128x256xf32> -> vector<128x256xf32>
    %c0_21 = arith.constant 0 : index
    %c0_22 = arith.constant 0 : index
    %24 = vector.load %arg9[%c0_21, %c0_22] : memref<1x256xf32, #tpu.memory_space<vmem>>, vector<1x256xf32>
    %25 = vector.broadcast %24 : vector<1x256xf32> to vector<128x256xf32>
    %26 = arith.addf %23, %25 : vector<128x256xf32>
    %cst_23 = arith.constant 0.000000e+00 : f32
    %27 = vector.broadcast %cst_23 : f32 to vector<128x256xf32>
    %28 = arith.maximumf %26, %27 : vector<128x256xf32>
    %c0_24 = arith.constant 0 : index
    %c0_25 = arith.constant 0 : index
    %29 = vector.load %arg10[%c0_24, %c0_25] : memref<256x128xf32, #tpu.memory_space<vmem>>, vector<256x128xf32>
    %cst_26 = arith.constant dense<0.000000e+00> : vector<128x128xf32>
    %30 = tpu.matmul %28, %29, %cst_26 {dimension_numbers = #tpu.dot_dimension_numbers<[1], [0], [0], [1], [0, 0, 1, 1], [], []>} : vector<128x256xf32>, vector<256x128xf32>, vector<128x128xf32> -> vector<128x128xf32>
    %c0_27 = arith.constant 0 : index
    %c0_28 = arith.constant 0 : index
    %31 = vector.load %arg11[%c0_27, %c0_28] : memref<1x128xf32, #tpu.memory_space<vmem>>, vector<1x128xf32>
    %32 = vector.broadcast %31 : vector<1x128xf32> to vector<128x128xf32>
    %33 = arith.addf %30, %32 : vector<128x128xf32>
    %cst_29 = arith.constant 0.000000e+00 : f32
    %34 = vector.broadcast %cst_29 : f32 to vector<128x128xf32>
    %35 = arith.maximumf %33, %34 : vector<128x128xf32>
    %c0_30 = arith.constant 0 : index
    %c0_31 = arith.constant 0 : index
    %36 = vector.load %arg12[%c0_30, %c0_31] : memref<128x16xf32, #tpu.memory_space<vmem>>, vector<128x16xf32>
    %cst_32 = arith.constant dense<0.000000e+00> : vector<128x16xf32>
    %37 = tpu.matmul %35, %36, %cst_32 {dimension_numbers = #tpu.dot_dimension_numbers<[1], [0], [0], [1], [0, 0, 1, 1], [], []>} : vector<128x128xf32>, vector<128x16xf32>, vector<128x16xf32> -> vector<128x16xf32>
    %c0_33 = arith.constant 0 : index
    %c0_34 = arith.constant 0 : index
    %38 = vector.load %arg13[%c0_33, %c0_34] : memref<1x16xf32, #tpu.memory_space<vmem>>, vector<1x16xf32>
    %39 = vector.broadcast %38 : vector<1x16xf32> to vector<128x16xf32>
    %40 = arith.addf %37, %39 : vector<128x16xf32>
    %c0_35 = arith.constant 0 : index
    %c0_36 = arith.constant 0 : index
    %41 = vector.load %arg14[%c0_35, %c0_36] : memref<128x16xf32, #tpu.memory_space<vmem>>, vector<128x16xf32>
    tpu.vector_store %arg14[%c0_35, %c0_36], %40 {strides = array<i32>} : memref<128x16xf32, #tpu.memory_space<vmem>>, vector<128x16xf32>,
    return
  }
  func.func @transform_0(%arg0: i32) -> (i32, i32) {
    %c0_i32 = arith.constant 0 : i32
    %c0_i32_0 = arith.constant 0 : i32
    return %arg0, %c0_i32 : i32, i32
  }
  func.func @transform_1(%arg0: i32) -> (i32, i32) {
    %c0_i32 = arith.constant 0 : i32
    %c0_i32_0 = arith.constant 0 : i32
    %c0_i32_1 = arith.constant 0 : i32
    return %c0_i32, %c0_i32_0 : i32, i32
  }
  func.func @transform_2(%arg0: i32) -> (i32, i32) {
    %c0_i32 = arith.constant 0 : i32
    %c0_i32_0 = arith.constant 0 : i32
    %c0_i32_1 = arith.constant 0 : i32
    return %c0_i32, %c0_i32_0 : i32, i32
  }
  func.func @transform_3(%arg0: i32) -> (i32, i32) {
    %c0_i32 = arith.constant 0 : i32
    %c0_i32_0 = arith.constant 0 : i32
    %c0_i32_1 = arith.constant 0 : i32
    return %c0_i32, %c0_i32_0 : i32, i32
  }
  func.func @transform_4(%arg0: i32) -> (i32, i32) {
    %c0_i32 = arith.constant 0 : i32
    %c0_i32_0 = arith.constant 0 : i32
    %c0_i32_1 = arith.constant 0 : i32
    return %c0_i32, %c0_i32_0 : i32, i32
  }
  func.func @transform_5(%arg0: i32) -> (i32, i32) {
    %c0_i32 = arith.constant 0 : i32
    %c0_i32_0 = arith.constant 0 : i32
    %c0_i32_1 = arith.constant 0 : i32
    return %c0_i32, %c0_i32_0 : i32, i32
  }
  func.func @transform_6(%arg0: i32) -> (i32, i32) {
    %c0_i32 = arith.constant 0 : i32
    %c0_i32_0 = arith.constant 0 : i32
    %c0_i32_1 = arith.constant 0 : i32
    return %c0_i32, %c0_i32_0 : i32, i32
  }
  func.func @transform_7(%arg0: i32) -> (i32, i32) {
    %c0_i32 = arith.constant 0 : i32
    %c0_i32_0 = arith.constant 0 : i32
    %c0_i32_1 = arith.constant 0 : i32
    return %c0_i32, %c0_i32_0 : i32, i32
  }
  func.func @transform_8(%arg0: i32) -> (i32, i32) {
    %c0_i32 = arith.constant 0 : i32
    %c0_i32_0 = arith.constant 0 : i32
    %c0_i32_1 = arith.constant 0 : i32
    return %c0_i32, %c0_i32_0 : i32, i32
  }
  func.func @transform_9(%arg0: i32) -> (i32, i32) {
    %c0_i32 = arith.constant 0 : i32
    %c0_i32_0 = arith.constant 0 : i32
    %c0_i32_1 = arith.constant 0 : i32
    return %c0_i32, %c0_i32_0 : i32, i32
  }
  func.func @transform_10(%arg0: i32) -> (i32, i32) {
    %c0_i32 = arith.constant 0 : i32
    %c0_i32_0 = arith.constant 0 : i32
    %c0_i32_1 = arith.constant 0 : i32
    return %c0_i32, %c0_i32_0 : i32, i32
  }
  func.func @transform_11(%arg0: i32) -> (i32, i32) {
    %c0_i32 = arith.constant 0 : i32
    %c0_i32_0 = arith.constant 0 : i32
    %c0_i32_1 = arith.constant 0 : i32
    return %c0_i32, %c0_i32_0 : i32, i32
  }
  func.func @transform_12(%arg0: i32) -> (i32, i32) {
    %c0_i32 = arith.constant 0 : i32
    %c0_i32_0 = arith.constant 0 : i32
    %c0_i32_1 = arith.constant 0 : i32
    return %c0_i32, %c0_i32_0 : i32, i32
  }
  func.func @transform_13(%arg0: i32) -> (i32, i32) {
    %c0_i32 = arith.constant 0 : i32
    %c0_i32_0 = arith.constant 0 : i32
    return %arg0, %c0_i32 : i32, i32
  }
}

</mosaic_0001>

<llo_original>
// kernel: tpu_custom_call.1
$region0: #{tpu_custom_call.1}
  #allocation0 [shape = 'u32[]', space=smem, size = 0x4, offset = 0x4, fixed_abs, tag = 'smem constant byte address 0x4 - core index']
  #allocation1 [shape = 'u32[144,128]{1,0:T(1,128)}', space=vmem, size = 0x12000, scoped, tag = 'internal scratch']
  %s0 = inlined_call_operand.vmem [shape: f32[16,32], index: 0, kind: input, shape index: {}]
  %s1 = inlined_call_operand.hbm [shape: f32[32,64], index: 1, kind: input, shape index: {}]
  %s2 = inlined_call_operand.vmem [shape: f32[1,64], index: 2, kind: input, shape index: {}]
  %s3 = inlined_call_operand.hbm [shape: f32[64,64], index: 3, kind: input, shape index: {}]
  %s4 = inlined_call_operand.vmem [shape: f32[1,64], index: 4, kind: input, shape index: {}]
  %s5 = inlined_call_operand.hbm [shape: f32[64,64], index: 5, kind: input, shape index: {}]
  %s6 = inlined_call_operand.hbm [shape: f32[1,64], index: 6, kind: input, shape index: {}]
  %s7 = inlined_call_operand.vmem [shape: f32[64,256], index: 7, kind: input, shape index: {}]
  %s8 = inlined_call_operand.vmem [shape: f32[1,256], index: 8, kind: input, shape index: {}]
  %s9 = inlined_call_operand.hbm [shape: f32[256,128], index: 9, kind: input, shape index: {}]
  %s10 = inlined_call_operand.hbm [shape: f32[1,128], index: 10, kind: input, shape index: {}]
  %s11 = inlined_call_operand.vmem [shape: f32[128,16], index: 11, kind: input, shape index: {}]
  %s12 = inlined_call_operand.vmem [shape: f32[1,16], index: 12, kind: input, shape index: {}]
  %s13 = inlined_call_operand.hbm [shape: f32[16,16], index: 13, kind: output, shape index: {}]
  %s14 = sld [smem:[#allocation0]]
  $region86: #{tpu_custom_call.1} parent=0
    _
  %s16 = ssub.s32 1, %s14
  %s17 = scalar_select 0, %s16, %s14
  $region1: #{tpu_custom_call.1} parent=0
    #allocation2 [shape = 'u8[16384]{0}', space=vmem, size = 0x4000, scoped, tag = 'input window, operand 1, single buffered']
    #allocation3 [shape = 's32[1]{0}', space=sflag, size = 0x4, scoped, tag = 'scoped memory for tpu_custom_call.1']
    #allocation4 [shape = 's32[1]{0}', space=sflag, size = 0x4, scoped, tag = 'scoped memory for tpu_custom_call.1']
    #allocation5 [shape = 'u8[32768]{0}', space=vmem, size = 0x8000, scoped, tag = 'input window, operand 3, single buffered']
    #allocation6 [shape = 's32[1]{0}', space=sflag, size = 0x4, scoped, tag = 'scoped memory for tpu_custom_call.1']
    #allocation7 [shape = 'u8[32768]{0}', space=vmem, size = 0x8000, scoped, tag = 'input window, operand 5, single buffered']
    #allocation8 [shape = 'u8[512]{0}', space=vmem, size = 0x400, scoped, tag = 'input window, operand 6, single buffered']
    #allocation9 [shape = 's32[1]{0}', space=sflag, size = 0x4, scoped, tag = 'scoped memory for tpu_custom_call.1']
    #allocation10 [shape = 'u8[131072]{0}', space=vmem, size = 0x20000, scoped, tag = 'input window, operand 9, single buffered']
    #allocation11 [shape = 'u8[512]{0}', space=vmem, size = 0x400, scoped, tag = 'input window, operand 10, single buffered']
    #allocation12 [shape = 's32[1]{0}', space=sflag, size = 0x4, scoped, tag = 'scoped memory for tpu_custom_call.1']
    #allocation13 [shape = 'u8[65536]{0}', space=vmem, size = 0x10000, scoped, tag = 'output window, operand 0, single buffered']
    %18 = vsyncpa [#allocation3], 0
    %19 = vsyncpa [#allocation6], 0
    %20 = vsyncpa [#allocation9], 0
    %21 = vsyncpa [#allocation12], 0
    %22 = vsyncpa [#allocation4], 0
    // Predicated region
    $region2: #{tpu_custom_call.1} parent=1 // pred_check
      _
    $region3: #{tpu_custom_call.1} parent=1 // pred_check_branch
      %24 = sbr.rel (0) target = $region5
    $region4: #{tpu_custom_call.1} parent=1 // pred_region
      _
    $region5: #{tpu_custom_call.1} parent=1 // pred_fallthru
      _
    // Predicated region
    $region6: #{tpu_custom_call.1} parent=1 // pred_check
      _
    $region7: #{tpu_custom_call.1} parent=1 // pred_check_branch
      %26 = sbr.rel (0) target = $region9
    $region8: #{tpu_custom_call.1} parent=1 // pred_region
      %s28 = ssub.s32 512, 512
      %29 = vsyncadd [#allocation3], %s28
      %s30 = sshll.u32 [#allocation2], 4
      %s31 = int_to_ptr.vmem [resolvable:$true] %s30
      %36 = dma.hbm_to_vmem [thread:$0]  %s1, 512, %s31, [#allocation3], 128, 128, 8
    $region9: #{tpu_custom_call.1} parent=1 // pred_fallthru
      _
    // Predicated region
    $region10: #{tpu_custom_call.1} parent=1 // pred_check
      _
    $region11: #{tpu_custom_call.1} parent=1 // pred_check_branch
      %38 = sbr.rel (0) target = $region13
    $region12: #{tpu_custom_call.1} parent=1 // pred_region
      _
    $region13: #{tpu_custom_call.1} parent=1 // pred_fallthru
      _
    // Predicated region
    $region14: #{tpu_custom_call.1} parent=1 // pred_check
      _
    $region15: #{tpu_custom_call.1} parent=1 // pred_check_branch
      %40 = sbr.rel (0) target = $region17
    $region16: #{tpu_custom_call.1} parent=1 // pred_region
      %s42 = ssub.s32 1024, 1024
      %43 = vsyncadd [#allocation6], %s42
      %s44 = sshll.u32 [#allocation5], 4
      %s45 = int_to_ptr.vmem [resolvable:$true] %s44
      %50 = dma.hbm_to_vmem [thread:$0]  %s3, 1024, %s45, [#allocation6], 128, 128, 8
    $region17: #{tpu_custom_call.1} parent=1 // pred_fallthru
      _
    // Predicated region
    $region18: #{tpu_custom_call.1} parent=1 // pred_check
      _
    $region19: #{tpu_custom_call.1} parent=1 // pred_check_branch
      %52 = sbr.rel (0) target = $region21
    $region20: #{tpu_custom_call.1} parent=1 // pred_region
      _
    $region21: #{tpu_custom_call.1} parent=1 // pred_fallthru
      _
    // Predicated region
    $region22: #{tpu_custom_call.1} parent=1 // pred_check
      _
    $region23: #{tpu_custom_call.1} parent=1 // pred_check_branch
      %54 = sbr.rel (0) target = $region25
    $region24: #{tpu_custom_call.1} parent=1 // pred_region
      %s56 = ssub.s32 1024, 1024
      %57 = vsyncadd [#allocation6], %s56
      %s58 = sshll.u32 [#allocation7], 4
      %s59 = int_to_ptr.vmem [resolvable:$true] %s58
      %64 = dma.hbm_to_vmem [thread:$0]  %s5, 1024, %s59, [#allocation6], 128, 128, 8
    $region25: #{tpu_custom_call.1} parent=1 // pred_fallthru
      _
    // Predicated region
    $region26: #{tpu_custom_call.1} parent=1 // pred_check
      _
    $region27: #{tpu_custom_call.1} parent=1 // pred_check_branch
      %66 = sbr.rel (0) target = $region29
    $region28: #{tpu_custom_call.1} parent=1 // pred_region
      %s68 = ssub.s32 16, 16
      %69 = vsyncadd [#allocation9], %s68
      %s71 = sshll.u32 [#allocation8], 4
      %s72 = int_to_ptr.vmem [resolvable:$true] %s71
      %74 = dma.hbm_to_vmem [thread:$0]  %s6, 16, %s72, [#allocation9]
    $region29: #{tpu_custom_call.1} parent=1 // pred_fallthru
      _
    // Predicated region
    $region30: #{tpu_custom_call.1} parent=1 // pred_check
      _
    $region31: #{tpu_custom_call.1} parent=1 // pred_check_branch
      %76 = sbr.rel (0) target = $region33
    $region32: #{tpu_custom_call.1} parent=1 // pred_region
      _
    $region33: #{tpu_custom_call.1} parent=1 // pred_fallthru
      _
    // Predicated region
    $region34: #{tpu_custom_call.1} parent=1 // pred_check
      _
    $region35: #{tpu_custom_call.1} parent=1 // pred_check_branch
      %78 = sbr.rel (0) target = $region37
    $region36: #{tpu_custom_call.1} parent=1 // pred_region
      _
    $region37: #{tpu_custom_call.1} parent=1 // pred_fallthru
      _
    // Predicated region
    $region38: #{tpu_custom_call.1} parent=1 // pred_check
      _
    $region39: #{tpu_custom_call.1} parent=1 // pred_check_branch
      %80 = sbr.rel (0) target = $region41
    $region40: #{tpu_custom_call.1} parent=1 // pred_region
      %s82 = ssub.s32 4096, 4096
      %83 = vsyncadd [#allocation9], %s82
      %s84 = sshll.u32 [#allocation10], 4
      %s85 = int_to_ptr.vmem [resolvable:$true] %s84
      %90 = dma.hbm_to_vmem [thread:$0]  %s9, 4096, %s85, [#allocation9], 128, 128, 8
    $region41: #{tpu_custom_call.1} parent=1 // pred_fallthru
      _
    // Predicated region
    $region42: #{tpu_custom_call.1} parent=1 // pred_check
      _
    $region43: #{tpu_custom_call.1} parent=1 // pred_check_branch
      %92 = sbr.rel (0) target = $region45
    $region44: #{tpu_custom_call.1} parent=1 // pred_region
      %s94 = ssub.s32 16, 16
      %95 = vsyncadd [#allocation12], %s94
      %s97 = sshll.u32 [#allocation11], 4
      %s98 = int_to_ptr.vmem [resolvable:$true] %s97
      %100 = dma.hbm_to_vmem [thread:$0]  %s10, 16, %s98, [#allocation12]
    $region45: #{tpu_custom_call.1} parent=1 // pred_fallthru
      _
    // Predicated region
    $region46: #{tpu_custom_call.1} parent=1 // pred_check
      _
    $region47: #{tpu_custom_call.1} parent=1 // pred_check_branch
      %102 = sbr.rel (0) target = $region49
    $region48: #{tpu_custom_call.1} parent=1 // pred_region
      _
    $region49: #{tpu_custom_call.1} parent=1 // pred_fallthru
      _
    // Predicated region
    $region50: #{tpu_custom_call.1} parent=1 // pred_check
      _
    $region51: #{tpu_custom_call.1} parent=1 // pred_check_branch
      %104 = sbr.rel (0) target = $region53
    $region52: #{tpu_custom_call.1} parent=1 // pred_region
      _
    $region53: #{tpu_custom_call.1} parent=1 // pred_fallthru
      _
    // Predicated region
    $region54: #{tpu_custom_call.1} parent=1 // pred_check
      _
    $region55: #{tpu_custom_call.1} parent=1 // pred_check_branch
      %106 = sbr.rel (0) target = $region57
    $region56: #{tpu_custom_call.1} parent=1 // pred_region
      %107 = dma.done [#allocation3], 512
    $region57: #{tpu_custom_call.1} parent=1 // pred_fallthru
      _
    // Predicated region
    $region58: #{tpu_custom_call.1} parent=1 // pred_check
      _
    $region59: #{tpu_custom_call.1} parent=1 // pred_check_branch
      %109 = sbr.rel (0) target = $region61
    $region60: #{tpu_custom_call.1} parent=1 // pred_region
      %110 = dma.done [#allocation6], 1024
    $region61: #{tpu_custom_call.1} parent=1 // pred_fallthru
      _
    // Predicated region
    $region62: #{tpu_custom_call.1} parent=1 // pred_check
      _
    $region63: #{tpu_custom_call.1} parent=1 // pred_check_branch
      %112 = sbr.rel (0) target = $region65
    $region64: #{tpu_custom_call.1} parent=1 // pred_region
      %113 = dma.done [#allocation6], 1024
    $region65: #{tpu_custom_call.1} parent=1 // pred_fallthru
      _
    // Predicated region
    $region66: #{tpu_custom_call.1} parent=1 // pred_check
      _
    $region67: #{tpu_custom_call.1} parent=1 // pred_check_branch
      %115 = sbr.rel (0) target = $region69
    $region68: #{tpu_custom_call.1} parent=1 // pred_region
      %116 = dma.done [#allocation9], 16
    $region69: #{tpu_custom_call.1} parent=1 // pred_fallthru
      _
    // Predicated region
    $region70: #{tpu_custom_call.1} parent=1 // pred_check
      _
    $region71: #{tpu_custom_call.1} parent=1 // pred_check_branch
      %118 = sbr.rel (0) target = $region73
    $region72: #{tpu_custom_call.1} parent=1 // pred_region
      %119 = dma.done [#allocation9], 4096
    $region73: #{tpu_custom_call.1} parent=1 // pred_fallthru
      _
    // Predicated region
    $region74: #{tpu_custom_call.1} parent=1 // pred_check
      _
    $region75: #{tpu_custom_call.1} parent=1 // pred_check_branch
      %121 = sbr.rel (0) target = $region77
    $region76: #{tpu_custom_call.1} parent=1 // pred_region
      %122 = dma.done [#allocation12], 16
    $region77: #{tpu_custom_call.1} parent=1 // pred_fallthru
      _
    %v123 = vld [vmem:[%s0] sm:$0xff]
    %v124 = vld [vmem:[%s0 + $0x8] sm:$0xff]
    %v125 = vld [vmem:[%s0 + $0x10] sm:$0xff]
    %v126 = vld [vmem:[%s0 + $0x18] sm:$0xff]
    %v127 = vld [vmem:[%s0 + $0x20] sm:$0xff]
    %v128 = vld [vmem:[%s0 + $0x28] sm:$0xff]
    %v129 = vld [vmem:[%s0 + $0x30] sm:$0xff]
    %v130 = vld [vmem:[%s0 + $0x38] sm:$0xff]
    %v131 = vld [vmem:[%s0 + $0x40] sm:$0xff]
    %v132 = vld [vmem:[%s0 + $0x48] sm:$0xff]
    %v133 = vld [vmem:[%s0 + $0x50] sm:$0xff]
    %v134 = vld [vmem:[%s0 + $0x58] sm:$0xff]
    %v135 = vld [vmem:[%s0 + $0x60] sm:$0xff]
    %v136 = vld [vmem:[%s0 + $0x68] sm:$0xff]
    %v137 = vld [vmem:[%s0 + $0x70] sm:$0xff]
    %v138 = vld [vmem:[%s0 + $0x78] sm:$0xff]
    %v139 = vld [vmem:[#allocation2] sm:$0xff]
    %v140 = vld [vmem:[#allocation2 + $0x8] sm:$0xff]
    %v141 = vld [vmem:[#allocation2 + $0x10] sm:$0xff]
    %v142 = vld [vmem:[#allocation2 + $0x18] sm:$0xff]
    %v143 = vld [vmem:[%s2] sm:$0x1]
    %v145 = vlaneseq
    %v146 = vshrl.u32 %v145, 7
    %v147 = vsub.s32 0, %v146
    %v148 = vrot.slane %v143, %v147
    %vm150 = vcmask 261120
    %v152 = vsel %vm150, %v123, 0
    %v155 = vsel %vm150, %v124, 0
    %v158 = vsel %vm150, %v125, 0
    %v161 = vsel %vm150, %v126, 0
    %v164 = vsel %vm150, %v127, 0
    %v167 = vsel %vm150, %v128, 0
    %v170 = vsel %vm150, %v129, 0
    %v173 = vsel %vm150, %v130, 0
    %v176 = vsel %vm150, %v131, 0
    %v179 = vsel %vm150, %v132, 0
    %v182 = vsel %vm150, %v133, 0
    %v185 = vsel %vm150, %v134, 0
    %v188 = vsel %vm150, %v135, 0
    %v191 = vsel %vm150, %v136, 0
    %v194 = vsel %vm150, %v137, 0
    %v197 = vsel %vm150, %v138, 0
    %199 = vmatprep.subr.mxu0 0.0
    %200 = vmatpush1.msra.mxu0 0.0
    %201 = vmatprep.subr.mxu0 0.0
    %202 = vmatpush1.msra.mxu0 0.0
    %203 = vmatprep.subr.mxu0 0.0
    %204 = vmatpush1.msra.mxu0 0.0
    %205 = vmatprep.subr.mxu0 0.0
    %206 = vmatpush1.msra.mxu0 0.0
    %207 = vmatprep.subr.mxu0 0.0
    %208 = vmatpush1.msra.mxu0 0.0
    %209 = vmatprep.subr.mxu0 0.0
    %210 = vmatpush1.msra.mxu0 0.0
    %211 = vmatprep.subr.mxu0 0.0
    %212 = vmatpush1.msra.mxu0 0.0
    %213 = vmatprep.subr.mxu0 0.0
    %214 = vmatpush1.msra.mxu0 0.0
    %215 = vmatprep.subr.mxu0 0.0
    %216 = vmatpush1.msra.mxu0 0.0
    %217 = vmatprep.subr.mxu0 0.0
    %218 = vmatpush1.msra.mxu0 0.0
    %219 = vmatprep.subr.mxu0 0.0
    %220 = vmatpush1.msra.mxu0 0.0
    %221 = vmatprep.subr.mxu0 0.0
    %222 = vmatpush1.msra.mxu0 0.0
    %223 = vmatprep.subr.mxu0 0.0
    %224 = vmatpush1.msra.mxu0 %v142
    %225 = vmatprep.subr.mxu0 0.0
    %226 = vmatpush1.msra.mxu0 %v141
    %227 = vmatprep.subr.mxu0 0.0
    %228 = vmatpush1.msra.mxu0 %v140
    %229 = vmatprep.subr.mxu0 0.0
    %230 = vmatpush1.msra.mxu0 %v139
    %231 = vmatprep.subr.mxu0 0.0
    %232 = vmatpush2.msra.mxu0 0.0
    %233 = vmatprep.subr.mxu0 0.0
    %234 = vmatpush2.msra.mxu0 0.0
    %235 = vmatprep.subr.mxu0 0.0
    %236 = vmatpush2.msra.mxu0 0.0
    %237 = vmatprep.subr.mxu0 0.0
    %238 = vmatpush2.msra.mxu0 0.0
    %239 = vmatprep.subr.mxu0 0.0
    %240 = vmatpush2.msra.mxu0 0.0
    %241 = vmatprep.subr.mxu0 0.0
    %242 = vmatpush2.msra.mxu0 0.0
    %243 = vmatprep.subr.mxu0 0.0
    %244 = vmatpush2.msra.mxu0 0.0
    %245 = vmatprep.subr.mxu0 0.0
    %246 = vmatpush2.msra.mxu0 0.0
    %247 = vmatprep.subr.mxu0 0.0
    %248 = vmatpush2.msra.mxu0 0.0
    %249 = vmatprep.subr.mxu0 0.0
    %250 = vmatpush2.msra.mxu0 0.0
    %251 = vmatprep.subr.mxu0 0.0
    %252 = vmatpush2.msra.mxu0 0.0
    %253 = vmatprep.subr.mxu0 0.0
    %254 = vmatpush2.msra.mxu0 0.0
    %255 = vmatprep.subr.mxu0 0.0
    %256 = vmatpush2.msra.mxu0 0.0
    %257 = vmatprep.subr.mxu0 0.0
    %258 = vmatpush2.msra.mxu0 0.0
    %259 = vmatprep.subr.mxu0 0.0
    %260 = vmatpush2.msra.mxu0 0.0
    %261 = vmatprep.subr.mxu0 0.0
    %262 = vmatpush2.msra.mxu0 0.0
    %263 = vmatprep.mubr.f32.mxu0 0.0
    %264 = vmatmul.mubr.f32.gmra.mxu0 %v152
    %v265 = vpop.f32.mrf.mxu0
    %v266 = vadd.f32 %v148, %v265
    %v267 = vpop.f32.mrf.mxu0
    %268 = vmatprep.mubr.f32.mxu0 0.0
    %269 = vmatmul.mubr.f32.gmra.mxu0 %v155
    %v270 = vpop.f32.mrf.mxu0
    %v271 = vadd.f32 %v148, %v270
    %v272 = vpop.f32.mrf.mxu0
    %273 = vmatprep.mubr.f32.mxu0 0.0
    %274 = vmatmul.mubr.f32.gmra.mxu0 %v158
    %v275 = vpop.f32.mrf.mxu0
    %v276 = vadd.f32 %v148, %v275
    %v277 = vpop.f32.mrf.mxu0
    %278 = vmatprep.mubr.f32.mxu0 0.0
    %279 = vmatmul.mubr.f32.gmra.mxu0 %v161
    %v280 = vpop.f32.mrf.mxu0
    %v281 = vadd.f32 %v148, %v280
    %v282 = vpop.f32.mrf.mxu0
    %283 = vmatprep.mubr.f32.mxu0 0.0
    %284 = vmatmul.mubr.f32.gmra.mxu0 %v164
    %v285 = vpop.f32.mrf.mxu0
    %v286 = vadd.f32 %v148, %v285
    %v287 = vpop.f32.mrf.mxu0
    %288 = vmatprep.mubr.f32.mxu0 0.0
    %289 = vmatmul.mubr.f32.gmra.mxu0 %v167
    %v290 = vpop.f32.mrf.mxu0
    %v291 = vadd.f32 %v148, %v290
    %v292 = vpop.f32.mrf.mxu0
    %293 = vmatprep.mubr.f32.mxu0 0.0
    %294 = vmatmul.mubr.f32.gmra.mxu0 %v170
    %v295 = vpop.f32.mrf.mxu0
    %v296 = vadd.f32 %v148, %v295
    %v297 = vpop.f32.mrf.mxu0
    %298 = vmatprep.mubr.f32.mxu0 0.0
    %299 = vmatmul.mubr.f32.gmra.mxu0 %v173
    %v300 = vpop.f32.mrf.mxu0
    %v301 = vadd.f32 %v148, %v300
    %v302 = vpop.f32.mrf.mxu0
    %303 = vmatprep.mubr.f32.mxu0 0.0
    %304 = vmatmul.mubr.f32.gmra.mxu0 %v176
    %v305 = vpop.f32.mrf.mxu0
    %v306 = vadd.f32 %v148, %v305
    %v307 = vpop.f32.mrf.mxu0
    %308 = vmatprep.mubr.f32.mxu0 0.0
    %309 = vmatmul.mubr.f32.gmra.mxu0 %v179
    %v310 = vpop.f32.mrf.mxu0
    %v311 = vadd.f32 %v148, %v310
    %v312 = vpop.f32.mrf.mxu0
    %313 = vmatprep.mubr.f32.mxu0 0.0
    %314 = vmatmul.mubr.f32.gmra.mxu0 %v182
    %v315 = vpop.f32.mrf.mxu0
    %v316 = vadd.f32 %v148, %v315
    %v317 = vpop.f32.mrf.mxu0
    %318 = vmatprep.mubr.f32.mxu0 0.0
    %319 = vmatmul.mubr.f32.gmra.mxu0 %v185
    %v320 = vpop.f32.mrf.mxu0
    %v321 = vadd.f32 %v148, %v320
    %v322 = vpop.f32.mrf.mxu0
    %323 = vmatprep.mubr.f32.mxu0 0.0
    %324 = vmatmul.mubr.f32.gmra.mxu0 %v188
    %v325 = vpop.f32.mrf.mxu0
    %v326 = vadd.f32 %v148, %v325
    %v327 = vpop.f32.mrf.mxu0
    %328 = vmatprep.mubr.f32.mxu0 0.0
    %329 = vmatmul.mubr.f32.gmra.mxu0 %v191
    %v330 = vpop.f32.mrf.mxu0
    %v331 = vadd.f32 %v148, %v330
    %v332 = vpop.f32.mrf.mxu0
    %333 = vmatprep.mubr.f32.mxu0 0.0
    %334 = vmatmul.mubr.f32.gmra.mxu0 %v194
    %v335 = vpop.f32.mrf.mxu0
    %v336 = vadd.f32 %v148, %v335
    %v337 = vpop.f32.mrf.mxu0
    %338 = vmatprep.mubr.f32.mxu0 0.0
    %339 = vmatmul.mubr.f32.gmra.mxu0 %v197
    %v340 = vpop.f32.mrf.mxu0
    %v341 = vadd.f32 %v148, %v340
    %v342 = vpop.f32.mrf.mxu0
    %343 = vdwg.mxu0
    %v344 = vmax.f32 %v266, 0.0
    %v345 = vmax.f32 %v271, 0.0
    %v346 = vmax.f32 %v276, 0.0
    %v347 = vmax.f32 %v281, 0.0
    %v348 = vmax.f32 %v286, 0.0
    %v349 = vmax.f32 %v291, 0.0
    %v350 = vmax.f32 %v296, 0.0
    %v351 = vmax.f32 %v301, 0.0
    %v352 = vmax.f32 %v306, 0.0
    %v353 = vmax.f32 %v311, 0.0
    %v354 = vmax.f32 %v316, 0.0
    %v355 = vmax.f32 %v321, 0.0
    %v356 = vmax.f32 %v326, 0.0
    %v357 = vmax.f32 %v331, 0.0
    %v358 = vmax.f32 %v336, 0.0
    %v359 = vmax.f32 %v341, 0.0
    %v360 = vld [vmem:[#allocation5] sm:$0xff]
    %v361 = vld [vmem:[#allocation5 + $0x8] sm:$0xff]
    %v362 = vld [vmem:[#allocation5 + $0x10] sm:$0xff]
    %v363 = vld [vmem:[#allocation5 + $0x18] sm:$0xff]
    %v364 = vld [vmem:[#allocation5 + $0x20] sm:$0xff]
    %v365 = vld [vmem:[#allocation5 + $0x28] sm:$0xff]
    %v366 = vld [vmem:[#allocation5 + $0x30] sm:$0xff]
    %v367 = vld [vmem:[#allocation5 + $0x38] sm:$0xff]
    %v368 = vld [vmem:[%s4] sm:$0x1]
    %v370 = vlaneseq
    %v371 = vshrl.u32 %v370, 7
    %v372 = vsub.s32 0, %v371
    %v373 = vrot.slane %v368, %v372
    %vm375 = vcmask 523264
    %v377 = vsel %vm375, %v344, 0
    %v380 = vsel %vm375, %v345, 0
    %v383 = vsel %vm375, %v346, 0
    %v386 = vsel %vm375, %v347, 0
    %v389 = vsel %vm375, %v348, 0
    %v392 = vsel %vm375, %v349, 0
    %v395 = vsel %vm375, %v350, 0
    %v398 = vsel %vm375, %v351, 0
    %v401 = vsel %vm375, %v352, 0
    %v404 = vsel %vm375, %v353, 0
    %v407 = vsel %vm375, %v354, 0
    %v410 = vsel %vm375, %v355, 0
    %v413 = vsel %vm375, %v356, 0
    %v416 = vsel %vm375, %v357, 0
    %v419 = vsel %vm375, %v358, 0
    %v422 = vsel %vm375, %v359, 0
    %424 = vmatprep.subr.mxu0 0.0
    %425 = vmatpush1.msra.mxu0 0.0
    %426 = vmatprep.subr.mxu0 0.0
    %427 = vmatpush1.msra.mxu0 0.0
    %428 = vmatprep.subr.mxu0 0.0
    %429 = vmatpush1.msra.mxu0 0.0
    %430 = vmatprep.subr.mxu0 0.0
    %431 = vmatpush1.msra.mxu0 0.0
    %432 = vmatprep.subr.mxu0 0.0
    %433 = vmatpush1.msra.mxu0 0.0
    %434 = vmatprep.subr.mxu0 0.0
    %435 = vmatpush1.msra.mxu0 0.0
    %436 = vmatprep.subr.mxu0 0.0
    %437 = vmatpush1.msra.mxu0 0.0
    %438 = vmatprep.subr.mxu0 0.0
    %439 = vmatpush1.msra.mxu0 0.0
    %440 = vmatprep.subr.mxu0 0.0
    %441 = vmatpush1.msra.mxu0 %v367
    %442 = vmatprep.subr.mxu0 0.0
    %443 = vmatpush1.msra.mxu0 %v366
    %444 = vmatprep.subr.mxu0 0.0
    %445 = vmatpush1.msra.mxu0 %v365
    %446 = vmatprep.subr.mxu0 0.0
    %447 = vmatpush1.msra.mxu0 %v364
    %448 = vmatprep.subr.mxu0 0.0
    %449 = vmatpush1.msra.mxu0 %v363
    %450 = vmatprep.subr.mxu0 0.0
    %451 = vmatpush1.msra.mxu0 %v362
    %452 = vmatprep.subr.mxu0 0.0
    %453 = vmatpush1.msra.mxu0 %v361
    %454 = vmatprep.subr.mxu0 0.0
    %455 = vmatpush1.msra.mxu0 %v360
    %456 = vmatprep.subr.mxu0 0.0
    %457 = vmatpush2.msra.mxu0 0.0
    %458 = vmatprep.subr.mxu0 0.0
    %459 = vmatpush2.msra.mxu0 0.0
    %460 = vmatprep.subr.mxu0 0.0
    %461 = vmatpush2.msra.mxu0 0.0
    %462 = vmatprep.subr.mxu0 0.0
    %463 = vmatpush2.msra.mxu0 0.0
    %464 = vmatprep.subr.mxu0 0.0
    %465 = vmatpush2.msra.mxu0 0.0
    %466 = vmatprep.subr.mxu0 0.0
    %467 = vmatpush2.msra.mxu0 0.0
    %468 = vmatprep.subr.mxu0 0.0
    %469 = vmatpush2.msra.mxu0 0.0
    %470 = vmatprep.subr.mxu0 0.0
    %471 = vmatpush2.msra.mxu0 0.0
    %472 = vmatprep.subr.mxu0 0.0
    %473 = vmatpush2.msra.mxu0 0.0
    %474 = vmatprep.subr.mxu0 0.0
    %475 = vmatpush2.msra.mxu0 0.0
    %476 = vmatprep.subr.mxu0 0.0
    %477 = vmatpush2.msra.mxu0 0.0
    %478 = vmatprep.subr.mxu0 0.0
    %479 = vmatpush2.msra.mxu0 0.0
    %480 = vmatprep.subr.mxu0 0.0
    %481 = vmatpush2.msra.mxu0 0.0
    %482 = vmatprep.subr.mxu0 0.0
    %483 = vmatpush2.msra.mxu0 0.0
    %484 = vmatprep.subr.mxu0 0.0
    %485 = vmatpush2.msra.mxu0 0.0
    %486 = vmatprep.subr.mxu0 0.0
    %487 = vmatpush2.msra.mxu0 0.0
    %488 = vmatprep.mubr.f32.mxu0 0.0
    %489 = vmatmul.mubr.f32.gmra.mxu0 %v377
    %v490 = vpop.f32.mrf.mxu0
    %v491 = vadd.f32 %v373, %v490
    %v492 = vpop.f32.mrf.mxu0
    %493 = vmatprep.mubr.f32.mxu0 0.0
    %494 = vmatmul.mubr.f32.gmra.mxu0 %v380
    %v495 = vpop.f32.mrf.mxu0
    %v496 = vadd.f32 %v373, %v495
    %v497 = vpop.f32.mrf.mxu0
    %498 = vmatprep.mubr.f32.mxu0 0.0
    %499 = vmatmul.mubr.f32.gmra.mxu0 %v383
    %v500 = vpop.f32.mrf.mxu0
    %v501 = vadd.f32 %v373, %v500
    %v502 = vpop.f32.mrf.mxu0
    %503 = vmatprep.mubr.f32.mxu0 0.0
    %504 = vmatmul.mubr.f32.gmra.mxu0 %v386
    %v505 = vpop.f32.mrf.mxu0
    %v506 = vadd.f32 %v373, %v505
    %v507 = vpop.f32.mrf.mxu0
    %508 = vmatprep.mubr.f32.mxu0 0.0
    %509 = vmatmul.mubr.f32.gmra.mxu0 %v389
    %v510 = vpop.f32.mrf.mxu0
    %v511 = vadd.f32 %v373, %v510
    %v512 = vpop.f32.mrf.mxu0
    %513 = vmatprep.mubr.f32.mxu0 0.0
    %514 = vmatmul.mubr.f32.gmra.mxu0 %v392
    %v515 = vpop.f32.mrf.mxu0
    %v516 = vadd.f32 %v373, %v515
    %v517 = vpop.f32.mrf.mxu0
    %518 = vmatprep.mubr.f32.mxu0 0.0
    %519 = vmatmul.mubr.f32.gmra.mxu0 %v395
    %v520 = vpop.f32.mrf.mxu0
    %v521 = vadd.f32 %v373, %v520
    %v522 = vpop.f32.mrf.mxu0
    %523 = vmatprep.mubr.f32.mxu0 0.0
    %524 = vmatmul.mubr.f32.gmra.mxu0 %v398
    %v525 = vpop.f32.mrf.mxu0
    %v526 = vadd.f32 %v373, %v525
    %v527 = vpop.f32.mrf.mxu0
    %528 = vmatprep.mubr.f32.mxu0 0.0
    %529 = vmatmul.mubr.f32.gmra.mxu0 %v401
    %v530 = vpop.f32.mrf.mxu0
    %v531 = vadd.f32 %v373, %v530
    %v532 = vpop.f32.mrf.mxu0
    %533 = vmatprep.mubr.f32.mxu0 0.0
    %534 = vmatmul.mubr.f32.gmra.mxu0 %v404
    %v535 = vpop.f32.mrf.mxu0
    %v536 = vadd.f32 %v373, %v535
    %v537 = vpop.f32.mrf.mxu0
    %538 = vmatprep.mubr.f32.mxu0 0.0
    %539 = vmatmul.mubr.f32.gmra.mxu0 %v407
    %v540 = vpop.f32.mrf.mxu0
    %v541 = vadd.f32 %v373, %v540
    %v542 = vpop.f32.mrf.mxu0
    %543 = vmatprep.mubr.f32.mxu0 0.0
    %544 = vmatmul.mubr.f32.gmra.mxu0 %v410
    %v545 = vpop.f32.mrf.mxu0
    %v546 = vadd.f32 %v373, %v545
    %v547 = vpop.f32.mrf.mxu0
    %548 = vmatprep.mubr.f32.mxu0 0.0
    %549 = vmatmul.mubr.f32.gmra.mxu0 %v413
    %v550 = vpop.f32.mrf.mxu0
    %v551 = vadd.f32 %v373, %v550
    %v552 = vpop.f32.mrf.mxu0
    %553 = vmatprep.mubr.f32.mxu0 0.0
    %554 = vmatmul.mubr.f32.gmra.mxu0 %v416
    %v555 = vpop.f32.mrf.mxu0
    %v556 = vadd.f32 %v373, %v555
    %v557 = vpop.f32.mrf.mxu0
    %558 = vmatprep.mubr.f32.mxu0 0.0
    %559 = vmatmul.mubr.f32.gmra.mxu0 %v419
    %v560 = vpop.f32.mrf.mxu0
    %v561 = vadd.f32 %v373, %v560
    %v562 = vpop.f32.mrf.mxu0
    %563 = vmatprep.mubr.f32.mxu0 0.0
    %564 = vmatmul.mubr.f32.gmra.mxu0 %v422
    %v565 = vpop.f32.mrf.mxu0
    %v566 = vadd.f32 %v373, %v565
    %v567 = vpop.f32.mrf.mxu0
    %568 = vdwg.mxu0
    %v569 = vmax.f32 %v491, 0.0
    %v570 = vmax.f32 %v496, 0.0
    %v571 = vmax.f32 %v501, 0.0
    %v572 = vmax.f32 %v506, 0.0
    %v573 = vmax.f32 %v511, 0.0
    %v574 = vmax.f32 %v516, 0.0
    %v575 = vmax.f32 %v521, 0.0
    %v576 = vmax.f32 %v526, 0.0
    %v577 = vmax.f32 %v531, 0.0
    %v578 = vmax.f32 %v536, 0.0
    %v579 = vmax.f32 %v541, 0.0
    %v580 = vmax.f32 %v546, 0.0
    %v581 = vmax.f32 %v551, 0.0
    %v582 = vmax.f32 %v556, 0.0
    %v583 = vmax.f32 %v561, 0.0
    %v584 = vmax.f32 %v566, 0.0
    %v585 = vld [vmem:[#allocation7] sm:$0xff]
    %v586 = vld [vmem:[#allocation7 + $0x8] sm:$0xff]
    %v587 = vld [vmem:[#allocation7 + $0x10] sm:$0xff]
    %v588 = vld [vmem:[#allocation7 + $0x18] sm:$0xff]
    %v589 = vld [vmem:[#allocation7 + $0x20] sm:$0xff]
    %v590 = vld [vmem:[#allocation7 + $0x28] sm:$0xff]
    %v591 = vld [vmem:[#allocation7 + $0x30] sm:$0xff]
    %v592 = vld [vmem:[#allocation7 + $0x38] sm:$0xff]
    %v593 = vld [vmem:[#allocation8] sm:$0x1]
    %v595 = vlaneseq
    %v596 = vshrl.u32 %v595, 7
    %v597 = vsub.s32 0, %v596
    %v598 = vrot.slane %v593, %v597
    %v601 = vsel %vm375, %v569, 0
    %v604 = vsel %vm375, %v570, 0
    %v607 = vsel %vm375, %v571, 0
    %v610 = vsel %vm375, %v572, 0
    %v613 = vsel %vm375, %v573, 0
    %v616 = vsel %vm375, %v574, 0
    %v619 = vsel %vm375, %v575, 0
    %v622 = vsel %vm375, %v576, 0
    %v625 = vsel %vm375, %v577, 0
    %v628 = vsel %vm375, %v578, 0
    %v631 = vsel %vm375, %v579, 0
    %v634 = vsel %vm375, %v580, 0
    %v637 = vsel %vm375, %v581, 0
    %v640 = vsel %vm375, %v582, 0
    %v643 = vsel %vm375, %v583, 0
    %v646 = vsel %vm375, %v584, 0
    %648 = vmatprep.subr.mxu0 0.0
    %649 = vmatpush1.msra.mxu0 0.0
    %650 = vmatprep.subr.mxu0 0.0
    %651 = vmatpush1.msra.mxu0 0.0
    %652 = vmatprep.subr.mxu0 0.0
    %653 = vmatpush1.msra.mxu0 0.0
    %654 = vmatprep.subr.mxu0 0.0
    %655 = vmatpush1.msra.mxu0 0.0
    %656 = vmatprep.subr.mxu0 0.0
    %657 = vmatpush1.msra.mxu0 0.0
    %658 = vmatprep.subr.mxu0 0.0
    %659 = vmatpush1.msra.mxu0 0.0
    %660 = vmatprep.subr.mxu0 0.0
    %661 = vmatpush1.msra.mxu0 0.0
    %662 = vmatprep.subr.mxu0 0.0
    %663 = vmatpush1.msra.mxu0 0.0
    %664 = vmatprep.subr.mxu0 0.0
    %665 = vmatpush1.msra.mxu0 %v592
    %666 = vmatprep.subr.mxu0 0.0
    %667 = vmatpush1.msra.mxu0 %v591
    %668 = vmatprep.subr.mxu0 0.0
    %669 = vmatpush1.msra.mxu0 %v590
    %670 = vmatprep.subr.mxu0 0.0
    %671 = vmatpush1.msra.mxu0 %v589
    %672 = vmatprep.subr.mxu0 0.0
    %673 = vmatpush1.msra.mxu0 %v588
    %674 = vmatprep.subr.mxu0 0.0
    %675 = vmatpush1.msra.mxu0 %v587
    %676 = vmatprep.subr.mxu0 0.0
    %677 = vmatpush1.msra.mxu0 %v586
    %678 = vmatprep.subr.mxu0 0.0
    %679 = vmatpush1.msra.mxu0 %v585
    %680 = vmatprep.subr.mxu0 0.0
    %681 = vmatpush2.msra.mxu0 0.0
    %682 = vmatprep.subr.mxu0 0.0
    %683 = vmatpush2.msra.mxu0 0.0
    %684 = vmatprep.subr.mxu0 0.0
    %685 = vmatpush2.msra.mxu0 0.0
    %686 = vmatprep.subr.mxu0 0.0
    %687 = vmatpush2.msra.mxu0 0.0
    %688 = vmatprep.subr.mxu0 0.0
    %689 = vmatpush2.msra.mxu0 0.0
    %690 = vmatprep.subr.mxu0 0.0
    %691 = vmatpush2.msra.mxu0 0.0
    %692 = vmatprep.subr.mxu0 0.0
    %693 = vmatpush2.msra.mxu0 0.0
    %694 = vmatprep.subr.mxu0 0.0
    %695 = vmatpush2.msra.mxu0 0.0
    %696 = vmatprep.subr.mxu0 0.0
    %697 = vmatpush2.msra.mxu0 0.0
    %698 = vmatprep.subr.mxu0 0.0
    %699 = vmatpush2.msra.mxu0 0.0
    %700 = vmatprep.subr.mxu0 0.0
    %701 = vmatpush2.msra.mxu0 0.0
    %702 = vmatprep.subr.mxu0 0.0
    %703 = vmatpush2.msra.mxu0 0.0
    %704 = vmatprep.subr.mxu0 0.0
    %705 = vmatpush2.msra.mxu0 0.0
    %706 = vmatprep.subr.mxu0 0.0
    %707 = vmatpush2.msra.mxu0 0.0
    %708 = vmatprep.subr.mxu0 0.0
    %709 = vmatpush2.msra.mxu0 0.0
    %710 = vmatprep.subr.mxu0 0.0
    %711 = vmatpush2.msra.mxu0 0.0
    %712 = vmatprep.mubr.f32.mxu0 0.0
    %713 = vmatmul.mubr.f32.gmra.mxu0 %v601
    %v714 = vpop.f32.mrf.mxu0
    %v715 = vadd.f32 %v598, %v714
    %v716 = vpop.f32.mrf.mxu0
    %717 = vmatprep.mubr.f32.mxu0 0.0
    %718 = vmatmul.mubr.f32.gmra.mxu0 %v604
    %v719 = vpop.f32.mrf.mxu0
    %v720 = vadd.f32 %v598, %v719
    %v721 = vpop.f32.mrf.mxu0
    %722 = vmatprep.mubr.f32.mxu0 0.0
    %723 = vmatmul.mubr.f32.gmra.mxu0 %v607
    %v724 = vpop.f32.mrf.mxu0
    %v725 = vadd.f32 %v598, %v724
    %v726 = vpop.f32.mrf.mxu0
    %727 = vmatprep.mubr.f32.mxu0 0.0
    %728 = vmatmul.mubr.f32.gmra.mxu0 %v610
    %v729 = vpop.f32.mrf.mxu0
    %v730 = vadd.f32 %v598, %v729
    %v731 = vpop.f32.mrf.mxu0
    %732 = vmatprep.mubr.f32.mxu0 0.0
    %733 = vmatmul.mubr.f32.gmra.mxu0 %v613
    %v734 = vpop.f32.mrf.mxu0
    %v735 = vadd.f32 %v598, %v734
    %v736 = vpop.f32.mrf.mxu0
    %737 = vmatprep.mubr.f32.mxu0 0.0
    %738 = vmatmul.mubr.f32.gmra.mxu0 %v616
    %v739 = vpop.f32.mrf.mxu0
    %v740 = vadd.f32 %v598, %v739
    %v741 = vpop.f32.mrf.mxu0
    %742 = vmatprep.mubr.f32.mxu0 0.0
    %743 = vmatmul.mubr.f32.gmra.mxu0 %v619
    %v744 = vpop.f32.mrf.mxu0
    %v745 = vadd.f32 %v598, %v744
    %v746 = vpop.f32.mrf.mxu0
    %747 = vmatprep.mubr.f32.mxu0 0.0
    %748 = vmatmul.mubr.f32.gmra.mxu0 %v622
    %v749 = vpop.f32.mrf.mxu0
    %v750 = vadd.f32 %v598, %v749
    %v751 = vpop.f32.mrf.mxu0
    %752 = vmatprep.mubr.f32.mxu0 0.0
    %753 = vmatmul.mubr.f32.gmra.mxu0 %v625
    %v754 = vpop.f32.mrf.mxu0
    %v755 = vadd.f32 %v598, %v754
    %v756 = vpop.f32.mrf.mxu0
    %757 = vmatprep.mubr.f32.mxu0 0.0
    %758 = vmatmul.mubr.f32.gmra.mxu0 %v628
    %v759 = vpop.f32.mrf.mxu0
    %v760 = vadd.f32 %v598, %v759
    %v761 = vpop.f32.mrf.mxu0
    %762 = vmatprep.mubr.f32.mxu0 0.0
    %763 = vmatmul.mubr.f32.gmra.mxu0 %v631
    %v764 = vpop.f32.mrf.mxu0
    %v765 = vadd.f32 %v598, %v764
    %v766 = vpop.f32.mrf.mxu0
    %767 = vmatprep.mubr.f32.mxu0 0.0
    %768 = vmatmul.mubr.f32.gmra.mxu0 %v634
    %v769 = vpop.f32.mrf.mxu0
    %v770 = vadd.f32 %v598, %v769
    %v771 = vpop.f32.mrf.mxu0
    %772 = vmatprep.mubr.f32.mxu0 0.0
    %773 = vmatmul.mubr.f32.gmra.mxu0 %v637
    %v774 = vpop.f32.mrf.mxu0
    %v775 = vadd.f32 %v598, %v774
    %v776 = vpop.f32.mrf.mxu0
    %777 = vmatprep.mubr.f32.mxu0 0.0
    %778 = vmatmul.mubr.f32.gmra.mxu0 %v640
    %v779 = vpop.f32.mrf.mxu0
    %v780 = vadd.f32 %v598, %v779
    %v781 = vpop.f32.mrf.mxu0
    %782 = vmatprep.mubr.f32.mxu0 0.0
    %783 = vmatmul.mubr.f32.gmra.mxu0 %v643
    %v784 = vpop.f32.mrf.mxu0
    %v785 = vadd.f32 %v598, %v784
    %v786 = vpop.f32.mrf.mxu0
    %787 = vmatprep.mubr.f32.mxu0 0.0
    %788 = vmatmul.mubr.f32.gmra.mxu0 %v646
    %v789 = vpop.f32.mrf.mxu0
    %v790 = vadd.f32 %v598, %v789
    %v791 = vpop.f32.mrf.mxu0
    %792 = vdwg.mxu0
    %v793 = vmax.f32 %v715, 0.0
    %v794 = vmax.f32 %v720, 0.0
    %v795 = vmax.f32 %v725, 0.0
    %v796 = vmax.f32 %v730, 0.0
    %v797 = vmax.f32 %v735, 0.0
    %v798 = vmax.f32 %v740, 0.0
    %v799 = vmax.f32 %v745, 0.0
    %v800 = vmax.f32 %v750, 0.0
    %v801 = vmax.f32 %v755, 0.0
    %v802 = vmax.f32 %v760, 0.0
    %v803 = vmax.f32 %v765, 0.0
    %v804 = vmax.f32 %v770, 0.0
    %v805 = vmax.f32 %v775, 0.0
    %v806 = vmax.f32 %v780, 0.0
    %v807 = vmax.f32 %v785, 0.0
    %v808 = vmax.f32 %v790, 0.0
    %v809 = vld [vmem:[%s7] sm:$0xff]
    %v810 = vld [vmem:[%s7 + $0x8] sm:$0xff]
    %v811 = vld [vmem:[%s7 + $0x10] sm:$0xff]
    %v812 = vld [vmem:[%s7 + $0x18] sm:$0xff]
    %v813 = vld [vmem:[%s7 + $0x20] sm:$0xff]
    %v814 = vld [vmem:[%s7 + $0x28] sm:$0xff]
    %v815 = vld [vmem:[%s7 + $0x30] sm:$0xff]
    %v816 = vld [vmem:[%s7 + $0x38] sm:$0xff]
    %v817 = vld [vmem:[%s7 + $0x40] sm:$0xff]
    %v818 = vld [vmem:[%s7 + $0x48] sm:$0xff]
    %v819 = vld [vmem:[%s7 + $0x50] sm:$0xff]
    %v820 = vld [vmem:[%s7 + $0x58] sm:$0xff]
    %v821 = vld [vmem:[%s7 + $0x60] sm:$0xff]
    %v822 = vld [vmem:[%s7 + $0x68] sm:$0xff]
    %v823 = vld [vmem:[%s7 + $0x70] sm:$0xff]
    %v824 = vld [vmem:[%s7 + $0x78] sm:$0xff]
    %v825 = vld [vmem:[%s8] sm:$0x3]
    %v827 = vlaneseq
    %v828 = vshrl.u32 %v827, 7
    %v829 = vsub.s32 0, %v828
    %v830 = vrot.slane %v825, %v829
    %v831 = vlaneseq
    %v832 = vshrl.u32 %v831, 7
    %v833 = vsub.s32 1, %v832
    %v834 = vrot.slane %v825, %v833
    %v838 = vsel %vm375, %v793, 0
    %v841 = vsel %vm375, %v794, 0
    %v844 = vsel %vm375, %v795, 0
    %v847 = vsel %vm375, %v796, 0
    %v850 = vsel %vm375, %v797, 0
    %v853 = vsel %vm375, %v798, 0
    %v856 = vsel %vm375, %v799, 0
    %v859 = vsel %vm375, %v800, 0
    %v862 = vsel %vm375, %v801, 0
    %v865 = vsel %vm375, %v802, 0
    %v868 = vsel %vm375, %v803, 0
    %v871 = vsel %vm375, %v804, 0
    %v874 = vsel %vm375, %v805, 0
    %v877 = vsel %vm375, %v806, 0
    %v880 = vsel %vm375, %v807, 0
    %v883 = vsel %vm375, %v808, 0
    %885 = vmatprep.subr.mxu0 0.0
    %886 = vmatpush1.msra.mxu0 0.0
    %887 = vmatprep.subr.mxu0 0.0
    %888 = vmatpush1.msra.mxu0 0.0
    %889 = vmatprep.subr.mxu0 0.0
    %890 = vmatpush1.msra.mxu0 0.0
    %891 = vmatprep.subr.mxu0 0.0
    %892 = vmatpush1.msra.mxu0 0.0
    %893 = vmatprep.subr.mxu0 0.0
    %894 = vmatpush1.msra.mxu0 0.0
    %895 = vmatprep.subr.mxu0 0.0
    %896 = vmatpush1.msra.mxu0 0.0
    %897 = vmatprep.subr.mxu0 0.0
    %898 = vmatpush1.msra.mxu0 0.0
    %899 = vmatprep.subr.mxu0 0.0
    %900 = vmatpush1.msra.mxu0 0.0
    %901 = vmatprep.subr.mxu0 %v824
    %902 = vmatpush1.msra.mxu0 %v823
    %903 = vmatprep.subr.mxu0 %v822
    %904 = vmatpush1.msra.mxu0 %v821
    %905 = vmatprep.subr.mxu0 %v820
    %906 = vmatpush1.msra.mxu0 %v819
    %907 = vmatprep.subr.mxu0 %v818
    %908 = vmatpush1.msra.mxu0 %v817
    %909 = vmatprep.subr.mxu0 %v816
    %910 = vmatpush1.msra.mxu0 %v815
    %911 = vmatprep.subr.mxu0 %v814
    %912 = vmatpush1.msra.mxu0 %v813
    %913 = vmatprep.subr.mxu0 %v812
    %914 = vmatpush1.msra.mxu0 %v811
    %915 = vmatprep.subr.mxu0 %v810
    %916 = vmatpush1.msra.mxu0 %v809
    %917 = vmatprep.subr.mxu0 0.0
    %918 = vmatpush2.msra.mxu0 0.0
    %919 = vmatprep.subr.mxu0 0.0
    %920 = vmatpush2.msra.mxu0 0.0
    %921 = vmatprep.subr.mxu0 0.0
    %922 = vmatpush2.msra.mxu0 0.0
    %923 = vmatprep.subr.mxu0 0.0
    %924 = vmatpush2.msra.mxu0 0.0
    %925 = vmatprep.subr.mxu0 0.0
    %926 = vmatpush2.msra.mxu0 0.0
    %927 = vmatprep.subr.mxu0 0.0
    %928 = vmatpush2.msra.mxu0 0.0
    %929 = vmatprep.subr.mxu0 0.0
    %930 = vmatpush2.msra.mxu0 0.0
    %931 = vmatprep.subr.mxu0 0.0
    %932 = vmatpush2.msra.mxu0 0.0
    %933 = vmatprep.subr.mxu0 0.0
    %934 = vmatpush2.msra.mxu0 0.0
    %935 = vmatprep.subr.mxu0 0.0
    %936 = vmatpush2.msra.mxu0 0.0
    %937 = vmatprep.subr.mxu0 0.0
    %938 = vmatpush2.msra.mxu0 0.0
    %939 = vmatprep.subr.mxu0 0.0
    %940 = vmatpush2.msra.mxu0 0.0
    %941 = vmatprep.subr.mxu0 0.0
    %942 = vmatpush2.msra.mxu0 0.0
    %943 = vmatprep.subr.mxu0 0.0
    %944 = vmatpush2.msra.mxu0 0.0
    %945 = vmatprep.subr.mxu0 0.0
    %946 = vmatpush2.msra.mxu0 0.0
    %947 = vmatprep.subr.mxu0 0.0
    %948 = vmatpush2.msra.mxu0 0.0
    %949 = vmatprep.mubr.f32.mxu0 0.0
    %950 = vmatmul.mubr.f32.gmra.mxu0 %v838
    %v951 = vpop.f32.mrf.mxu0
    %v952 = vadd.f32 %v830, %v951
    %v953 = vpop.f32.mrf.mxu0
    %v954 = vadd.f32 %v834, %v953
    %955 = vmatprep.mubr.f32.mxu0 0.0
    %956 = vmatmul.mubr.f32.gmra.mxu0 %v841
    %v957 = vpop.f32.mrf.mxu0
    %v958 = vadd.f32 %v830, %v957
    %v959 = vpop.f32.mrf.mxu0
    %v960 = vadd.f32 %v834, %v959
    %961 = vmatprep.mubr.f32.mxu0 0.0
    %962 = vmatmul.mubr.f32.gmra.mxu0 %v844
    %v963 = vpop.f32.mrf.mxu0
    %v964 = vadd.f32 %v830, %v963
    %v965 = vpop.f32.mrf.mxu0
    %v966 = vadd.f32 %v834, %v965
    %967 = vmatprep.mubr.f32.mxu0 0.0
    %968 = vmatmul.mubr.f32.gmra.mxu0 %v847
    %v969 = vpop.f32.mrf.mxu0
    %v970 = vadd.f32 %v830, %v969
    %v971 = vpop.f32.mrf.mxu0
    %v972 = vadd.f32 %v834, %v971
    %973 = vmatprep.mubr.f32.mxu0 0.0
    %974 = vmatmul.mubr.f32.gmra.mxu0 %v850
    %v975 = vpop.f32.mrf.mxu0
    %v976 = vadd.f32 %v830, %v975
    %v977 = vpop.f32.mrf.mxu0
    %v978 = vadd.f32 %v834, %v977
    %979 = vmatprep.mubr.f32.mxu0 0.0
    %980 = vmatmul.mubr.f32.gmra.mxu0 %v853
    %v981 = vpop.f32.mrf.mxu0
    %v982 = vadd.f32 %v830, %v981
    %v983 = vpop.f32.mrf.mxu0
    %v984 = vadd.f32 %v834, %v983
    %985 = vmatprep.mubr.f32.mxu0 0.0
    %986 = vmatmul.mubr.f32.gmra.mxu0 %v856
    %v987 = vpop.f32.mrf.mxu0
    %v988 = vadd.f32 %v830, %v987
    %v989 = vpop.f32.mrf.mxu0
    %v990 = vadd.f32 %v834, %v989
    %991 = vmatprep.mubr.f32.mxu0 0.0
    %992 = vmatmul.mubr.f32.gmra.mxu0 %v859
    %v993 = vpop.f32.mrf.mxu0
    %v994 = vadd.f32 %v830, %v993
    %v995 = vpop.f32.mrf.mxu0
    %v996 = vadd.f32 %v834, %v995
    %997 = vmatprep.mubr.f32.mxu0 0.0
    %998 = vmatmul.mubr.f32.gmra.mxu0 %v862
    %v999 = vpop.f32.mrf.mxu0
    %v1000 = vadd.f32 %v830, %v999
    %v1001 = vpop.f32.mrf.mxu0
    %v1002 = vadd.f32 %v834, %v1001
    %1003 = vmatprep.mubr.f32.mxu0 0.0
    %1004 = vmatmul.mubr.f32.gmra.mxu0 %v865
    %v1005 = vpop.f32.mrf.mxu0
    %v1006 = vadd.f32 %v830, %v1005
    %v1007 = vpop.f32.mrf.mxu0
    %v1008 = vadd.f32 %v834, %v1007
    %1009 = vmatprep.mubr.f32.mxu0 0.0
    %1010 = vmatmul.mubr.f32.gmra.mxu0 %v868
    %v1011 = vpop.f32.mrf.mxu0
    %v1012 = vadd.f32 %v830, %v1011
    %v1013 = vpop.f32.mrf.mxu0
    %v1014 = vadd.f32 %v834, %v1013
    %1015 = vmatprep.mubr.f32.mxu0 0.0
    %1016 = vmatmul.mubr.f32.gmra.mxu0 %v871
    %v1017 = vpop.f32.mrf.mxu0
    %v1018 = vadd.f32 %v830, %v1017
    %v1019 = vpop.f32.mrf.mxu0
    %v1020 = vadd.f32 %v834, %v1019
    %1021 = vmatprep.mubr.f32.mxu0 0.0
    %1022 = vmatmul.mubr.f32.gmra.mxu0 %v874
    %v1023 = vpop.f32.mrf.mxu0
    %v1024 = vadd.f32 %v830, %v1023
    %v1025 = vpop.f32.mrf.mxu0
    %v1026 = vadd.f32 %v834, %v1025
    %1027 = vmatprep.mubr.f32.mxu0 0.0
    %1028 = vmatmul.mubr.f32.gmra.mxu0 %v877
    %v1029 = vpop.f32.mrf.mxu0
    %v1030 = vadd.f32 %v830, %v1029
    %v1031 = vpop.f32.mrf.mxu0
    %v1032 = vadd.f32 %v834, %v1031
    %1033 = vmatprep.mubr.f32.mxu0 0.0
    %1034 = vmatmul.mubr.f32.gmra.mxu0 %v880
    %v1035 = vpop.f32.mrf.mxu0
    %v1036 = vadd.f32 %v830, %v1035
    %v1037 = vpop.f32.mrf.mxu0
    %v1038 = vadd.f32 %v834, %v1037
    %1039 = vmatprep.mubr.f32.mxu0 0.0
    %1040 = vmatmul.mubr.f32.gmra.mxu0 %v883
    %v1041 = vpop.f32.mrf.mxu0
    %v1042 = vadd.f32 %v830, %v1041
    %v1043 = vpop.f32.mrf.mxu0
    %v1044 = vadd.f32 %v834, %v1043
    %1045 = vdwg.mxu0
    %v1046 = vmax.f32 %v952, 0.0
    %v1047 = vmax.f32 %v954, 0.0
    %v1048 = vmax.f32 %v958, 0.0
    %v1049 = vmax.f32 %v960, 0.0
    %v1050 = vmax.f32 %v964, 0.0
    %v1051 = vmax.f32 %v966, 0.0
    %v1052 = vmax.f32 %v970, 0.0
    %v1053 = vmax.f32 %v972, 0.0
    %v1054 = vmax.f32 %v976, 0.0
    %v1055 = vmax.f32 %v978, 0.0
    %v1056 = vmax.f32 %v982, 0.0
    %v1057 = vmax.f32 %v984, 0.0
    %v1058 = vmax.f32 %v988, 0.0
    %v1059 = vmax.f32 %v990, 0.0
    %v1060 = vmax.f32 %v994, 0.0
    %v1061 = vmax.f32 %v996, 0.0
    %v1062 = vmax.f32 %v1000, 0.0
    %v1063 = vmax.f32 %v1002, 0.0
    %v1064 = vmax.f32 %v1006, 0.0
    %v1065 = vmax.f32 %v1008, 0.0
    %v1066 = vmax.f32 %v1012, 0.0
    %v1067 = vmax.f32 %v1014, 0.0
    %v1068 = vmax.f32 %v1018, 0.0
    %v1069 = vmax.f32 %v1020, 0.0
    %v1070 = vmax.f32 %v1024, 0.0
    %v1071 = vmax.f32 %v1026, 0.0
    %v1072 = vmax.f32 %v1030, 0.0
    %v1073 = vmax.f32 %v1032, 0.0
    %v1074 = vmax.f32 %v1036, 0.0
    %v1075 = vmax.f32 %v1038, 0.0
    %v1076 = vmax.f32 %v1042, 0.0
    %v1077 = vmax.f32 %v1044, 0.0
    %v1078 = vld [vmem:[#allocation10] sm:$0xff]
    %v1079 = vld [vmem:[#allocation10 + $0x8] sm:$0xff]
    %v1080 = vld [vmem:[#allocation10 + $0x10] sm:$0xff]
    %v1081 = vld [vmem:[#allocation10 + $0x18] sm:$0xff]
    %v1082 = vld [vmem:[#allocation10 + $0x20] sm:$0xff]
    %v1083 = vld [vmem:[#allocation10 + $0x28] sm:$0xff]
    %v1084 = vld [vmem:[#allocation10 + $0x30] sm:$0xff]
    %v1085 = vld [vmem:[#allocation10 + $0x38] sm:$0xff]
    %v1086 = vld [vmem:[#allocation10 + $0x40] sm:$0xff]
    %v1087 = vld [vmem:[#allocation10 + $0x48] sm:$0xff]
    %v1088 = vld [vmem:[#allocation10 + $0x50] sm:$0xff]
    %v1089 = vld [vmem:[#allocation10 + $0x58] sm:$0xff]
    %v1090 = vld [vmem:[#allocation10 + $0x60] sm:$0xff]
    %v1091 = vld [vmem:[#allocation10 + $0x68] sm:$0xff]
    %v1092 = vld [vmem:[#allocation10 + $0x70] sm:$0xff]
    %v1093 = vld [vmem:[#allocation10 + $0x78] sm:$0xff]
    %v1094 = vld [vmem:[#allocation10 + $0x80] sm:$0xff]
    %v1095 = vld [vmem:[#allocation10 + $0x88] sm:$0xff]
    %v1096 = vld [vmem:[#allocation10 + $0x90] sm:$0xff]
    %v1097 = vld [vmem:[#allocation10 + $0x98] sm:$0xff]
    %v1098 = vld [vmem:[#allocation10 + $0xa0] sm:$0xff]
    %v1099 = vld [vmem:[#allocation10 + $0xa8] sm:$0xff]
    %v1100 = vld [vmem:[#allocation10 + $0xb0] sm:$0xff]
    %v1101 = vld [vmem:[#allocation10 + $0xb8] sm:$0xff]
    %v1102 = vld [vmem:[#allocation10 + $0xc0] sm:$0xff]
    %v1103 = vld [vmem:[#allocation10 + $0xc8] sm:$0xff]
    %v1104 = vld [vmem:[#allocation10 + $0xd0] sm:$0xff]
    %v1105 = vld [vmem:[#allocation10 + $0xd8] sm:$0xff]
    %v1106 = vld [vmem:[#allocation10 + $0xe0] sm:$0xff]
    %v1107 = vld [vmem:[#allocation10 + $0xe8] sm:$0xff]
    %v1108 = vld [vmem:[#allocation10 + $0xf0] sm:$0xff]
    %v1109 = vld [vmem:[#allocation10 + $0xf8] sm:$0xff]
    %v1110 = vld [vmem:[#allocation11] sm:$0x1]
    %v1112 = vlaneseq
    %v1113 = vshrl.u32 %v1112, 7
    %v1114 = vsub.s32 0, %v1113
    %v1115 = vrot.slane %v1110, %v1114
    %1117 = vmatprep.subr.mxu0 0.0
    %1118 = vmatpush1.msra.mxu0 %v1093
    %1119 = vmatprep.subr.mxu0 0.0
    %1120 = vmatpush1.msra.mxu0 %v1092
    %1121 = vmatprep.subr.mxu0 0.0
    %1122 = vmatpush1.msra.mxu0 %v1091
    %1123 = vmatprep.subr.mxu0 0.0
    %1124 = vmatpush1.msra.mxu0 %v1090
    %1125 = vmatprep.subr.mxu0 0.0
    %1126 = vmatpush1.msra.mxu0 %v1089
    %1127 = vmatprep.subr.mxu0 0.0
    %1128 = vmatpush1.msra.mxu0 %v1088
    %1129 = vmatprep.subr.mxu0 0.0
    %1130 = vmatpush1.msra.mxu0 %v1087
    %1131 = vmatprep.subr.mxu0 0.0
    %1132 = vmatpush1.msra.mxu0 %v1086
    %1133 = vmatprep.subr.mxu0 0.0
    %1134 = vmatpush1.msra.mxu0 %v1085
    %1135 = vmatprep.subr.mxu0 0.0
    %1136 = vmatpush1.msra.mxu0 %v1084
    %1137 = vmatprep.subr.mxu0 0.0
    %1138 = vmatpush1.msra.mxu0 %v1083
    %1139 = vmatprep.subr.mxu0 0.0
    %1140 = vmatpush1.msra.mxu0 %v1082
    %1141 = vmatprep.subr.mxu0 0.0
    %1142 = vmatpush1.msra.mxu0 %v1081
    %1143 = vmatprep.subr.mxu0 0.0
    %1144 = vmatpush1.msra.mxu0 %v1080
    %1145 = vmatprep.subr.mxu0 0.0
    %1146 = vmatpush1.msra.mxu0 %v1079
    %1147 = vmatprep.subr.mxu0 0.0
    %1148 = vmatpush1.msra.mxu0 %v1078
    %1149 = vmatprep.subr.mxu0 0.0
    %1150 = vmatpush2.msra.mxu0 %v1109
    %1151 = vmatprep.subr.mxu0 0.0
    %1152 = vmatpush2.msra.mxu0 %v1108
    %1153 = vmatprep.subr.mxu0 0.0
    %1154 = vmatpush2.msra.mxu0 %v1107
    %1155 = vmatprep.subr.mxu0 0.0
    %1156 = vmatpush2.msra.mxu0 %v1106
    %1157 = vmatprep.subr.mxu0 0.0
    %1158 = vmatpush2.msra.mxu0 %v1105
    %1159 = vmatprep.subr.mxu0 0.0
    %1160 = vmatpush2.msra.mxu0 %v1104
    %1161 = vmatprep.subr.mxu0 0.0
    %1162 = vmatpush2.msra.mxu0 %v1103
    %1163 = vmatprep.subr.mxu0 0.0
    %1164 = vmatpush2.msra.mxu0 %v1102
    %1165 = vmatprep.subr.mxu0 0.0
    %1166 = vmatpush2.msra.mxu0 %v1101
    %1167 = vmatprep.subr.mxu0 0.0
    %1168 = vmatpush2.msra.mxu0 %v1100
    %1169 = vmatprep.subr.mxu0 0.0
    %1170 = vmatpush2.msra.mxu0 %v1099
    %1171 = vmatprep.subr.mxu0 0.0
    %1172 = vmatpush2.msra.mxu0 %v1098
    %1173 = vmatprep.subr.mxu0 0.0
    %1174 = vmatpush2.msra.mxu0 %v1097
    %1175 = vmatprep.subr.mxu0 0.0
    %1176 = vmatpush2.msra.mxu0 %v1096
    %1177 = vmatprep.subr.mxu0 0.0
    %1178 = vmatpush2.msra.mxu0 %v1095
    %1179 = vmatprep.subr.mxu0 0.0
    %1180 = vmatpush2.msra.mxu0 %v1094
    %1181 = vmatprep.mubr.f32.mxu0 %v1047
    %1182 = vmatmul.mubr.f32.gmra.mxu0 %v1046
    %v1183 = vpop.f32.mrf.mxu0
    %v1184 = vadd.f32 %v1115, %v1183
    %v1185 = vpop.f32.mrf.mxu0
    %1186 = vmatprep.mubr.f32.mxu0 %v1049
    %1187 = vmatmul.mubr.f32.gmra.mxu0 %v1048
    %v1188 = vpop.f32.mrf.mxu0
    %v1189 = vadd.f32 %v1115, %v1188
    %v1190 = vpop.f32.mrf.mxu0
    %1191 = vmatprep.mubr.f32.mxu0 %v1051
    %1192 = vmatmul.mubr.f32.gmra.mxu0 %v1050
    %v1193 = vpop.f32.mrf.mxu0
    %v1194 = vadd.f32 %v1115, %v1193
    %v1195 = vpop.f32.mrf.mxu0
    %1196 = vmatprep.mubr.f32.mxu0 %v1053
    %1197 = vmatmul.mubr.f32.gmra.mxu0 %v1052
    %v1198 = vpop.f32.mrf.mxu0
    %v1199 = vadd.f32 %v1115, %v1198
    %v1200 = vpop.f32.mrf.mxu0
    %1201 = vmatprep.mubr.f32.mxu0 %v1055
    %1202 = vmatmul.mubr.f32.gmra.mxu0 %v1054
    %v1203 = vpop.f32.mrf.mxu0
    %v1204 = vadd.f32 %v1115, %v1203
    %v1205 = vpop.f32.mrf.mxu0
    %1206 = vmatprep.mubr.f32.mxu0 %v1057
    %1207 = vmatmul.mubr.f32.gmra.mxu0 %v1056
    %v1208 = vpop.f32.mrf.mxu0
    %v1209 = vadd.f32 %v1115, %v1208
    %v1210 = vpop.f32.mrf.mxu0
    %1211 = vmatprep.mubr.f32.mxu0 %v1059
    %1212 = vmatmul.mubr.f32.gmra.mxu0 %v1058
    %v1213 = vpop.f32.mrf.mxu0
    %v1214 = vadd.f32 %v1115, %v1213
    %v1215 = vpop.f32.mrf.mxu0
    %1216 = vmatprep.mubr.f32.mxu0 %v1061
    %1217 = vmatmul.mubr.f32.gmra.mxu0 %v1060
    %v1218 = vpop.f32.mrf.mxu0
    %v1219 = vadd.f32 %v1115, %v1218
    %v1220 = vpop.f32.mrf.mxu0
    %1221 = vmatprep.mubr.f32.mxu0 %v1063
    %1222 = vmatmul.mubr.f32.gmra.mxu0 %v1062
    %v1223 = vpop.f32.mrf.mxu0
    %v1224 = vadd.f32 %v1115, %v1223
    %v1225 = vpop.f32.mrf.mxu0
    %1226 = vmatprep.mubr.f32.mxu0 %v1065
    %1227 = vmatmul.mubr.f32.gmra.mxu0 %v1064
    %v1228 = vpop.f32.mrf.mxu0
    %v1229 = vadd.f32 %v1115, %v1228
    %v1230 = vpop.f32.mrf.mxu0
    %1231 = vmatprep.mubr.f32.mxu0 %v1067
    %1232 = vmatmul.mubr.f32.gmra.mxu0 %v1066
    %v1233 = vpop.f32.mrf.mxu0
    %v1234 = vadd.f32 %v1115, %v1233
    %v1235 = vpop.f32.mrf.mxu0
    %1236 = vmatprep.mubr.f32.mxu0 %v1069
    %1237 = vmatmul.mubr.f32.gmra.mxu0 %v1068
    %v1238 = vpop.f32.mrf.mxu0
    %v1239 = vadd.f32 %v1115, %v1238
    %v1240 = vpop.f32.mrf.mxu0
    %1241 = vmatprep.mubr.f32.mxu0 %v1071
    %1242 = vmatmul.mubr.f32.gmra.mxu0 %v1070
    %v1243 = vpop.f32.mrf.mxu0
    %v1244 = vadd.f32 %v1115, %v1243
    %v1245 = vpop.f32.mrf.mxu0
    %1246 = vmatprep.mubr.f32.mxu0 %v1073
    %1247 = vmatmul.mubr.f32.gmra.mxu0 %v1072
    %v1248 = vpop.f32.mrf.mxu0
    %v1249 = vadd.f32 %v1115, %v1248
    %v1250 = vpop.f32.mrf.mxu0
    %1251 = vmatprep.mubr.f32.mxu0 %v1075
    %1252 = vmatmul.mubr.f32.gmra.mxu0 %v1074
    %v1253 = vpop.f32.mrf.mxu0
    %v1254 = vadd.f32 %v1115, %v1253
    %v1255 = vpop.f32.mrf.mxu0
    %1256 = vmatprep.mubr.f32.mxu0 %v1077
    %1257 = vmatmul.mubr.f32.gmra.mxu0 %v1076
    %v1258 = vpop.f32.mrf.mxu0
    %v1259 = vadd.f32 %v1115, %v1258
    %v1260 = vpop.f32.mrf.mxu0
    %1261 = vdwg.mxu0
    %v1262 = vmax.f32 %v1184, 0.0
    %v1263 = vmax.f32 %v1189, 0.0
    %v1264 = vmax.f32 %v1194, 0.0
    %v1265 = vmax.f32 %v1199, 0.0
    %v1266 = vmax.f32 %v1204, 0.0
    %v1267 = vmax.f32 %v1209, 0.0
    %v1268 = vmax.f32 %v1214, 0.0
    %v1269 = vmax.f32 %v1219, 0.0
    %v1270 = vmax.f32 %v1224, 0.0
    %v1271 = vmax.f32 %v1229, 0.0
    %v1272 = vmax.f32 %v1234, 0.0
    %v1273 = vmax.f32 %v1239, 0.0
    %v1274 = vmax.f32 %v1244, 0.0
    %v1275 = vmax.f32 %v1249, 0.0
    %v1276 = vmax.f32 %v1254, 0.0
    %v1277 = vmax.f32 %v1259, 0.0
    %v1278 = vld [vmem:[%s11] sm:$0xff]
    %v1279 = vld [vmem:[%s11 + $0x8] sm:$0xff]
    %v1280 = vld [vmem:[%s11 + $0x10] sm:$0xff]
    %v1281 = vld [vmem:[%s11 + $0x18] sm:$0xff]
    %v1282 = vld [vmem:[%s11 + $0x20] sm:$0xff]
    %v1283 = vld [vmem:[%s11 + $0x28] sm:$0xff]
    %v1284 = vld [vmem:[%s11 + $0x30] sm:$0xff]
    %v1285 = vld [vmem:[%s11 + $0x38] sm:$0xff]
    %v1286 = vld [vmem:[%s11 + $0x40] sm:$0xff]
    %v1287 = vld [vmem:[%s11 + $0x48] sm:$0xff]
    %v1288 = vld [vmem:[%s11 + $0x50] sm:$0xff]
    %v1289 = vld [vmem:[%s11 + $0x58] sm:$0xff]
    %v1290 = vld [vmem:[%s11 + $0x60] sm:$0xff]
    %v1291 = vld [vmem:[%s11 + $0x68] sm:$0xff]
    %v1292 = vld [vmem:[%s11 + $0x70] sm:$0xff]
    %v1293 = vld [vmem:[%s11 + $0x78] sm:$0xff]
    %v1294 = vld [vmem:[%s12] sm:$0x1]
    %v1296 = vlaneseq
    %v1297 = vshrl.u32 %v1296, 7
    %v1298 = vsub.s32 0, %v1297
    %v1299 = vrot.slane %v1294, %v1298
    %1301 = vmatprep.subr.mxu0 0.0
    %1302 = vmatpush1.msra.mxu0 %v1293
    %1303 = vmatprep.subr.mxu0 0.0
    %1304 = vmatpush1.msra.mxu0 %v1292
    %1305 = vmatprep.subr.mxu0 0.0
    %1306 = vmatpush1.msra.mxu0 %v1291
    %1307 = vmatprep.subr.mxu0 0.0
    %1308 = vmatpush1.msra.mxu0 %v1290
    %1309 = vmatprep.subr.mxu0 0.0
    %1310 = vmatpush1.msra.mxu0 %v1289
    %1311 = vmatprep.subr.mxu0 0.0
    %1312 = vmatpush1.msra.mxu0 %v1288
    %1313 = vmatprep.subr.mxu0 0.0
    %1314 = vmatpush1.msra.mxu0 %v1287
    %1315 = vmatprep.subr.mxu0 0.0
    %1316 = vmatpush1.msra.mxu0 %v1286
    %1317 = vmatprep.subr.mxu0 0.0
    %1318 = vmatpush1.msra.mxu0 %v1285
    %1319 = vmatprep.subr.mxu0 0.0
    %1320 = vmatpush1.msra.mxu0 %v1284
    %1321 = vmatprep.subr.mxu0 0.0
    %1322 = vmatpush1.msra.mxu0 %v1283
    %1323 = vmatprep.subr.mxu0 0.0
    %1324 = vmatpush1.msra.mxu0 %v1282
    %1325 = vmatprep.subr.mxu0 0.0
    %1326 = vmatpush1.msra.mxu0 %v1281
    %1327 = vmatprep.subr.mxu0 0.0
    %1328 = vmatpush1.msra.mxu0 %v1280
    %1329 = vmatprep.subr.mxu0 0.0
    %1330 = vmatpush1.msra.mxu0 %v1279
    %1331 = vmatprep.subr.mxu0 0.0
    %1332 = vmatpush1.msra.mxu0 %v1278
    %1333 = vmatprep.subr.mxu0 0.0
    %1334 = vmatpush2.msra.mxu0 0.0
    %1335 = vmatprep.subr.mxu0 0.0
    %1336 = vmatpush2.msra.mxu0 0.0
    %1337 = vmatprep.subr.mxu0 0.0
    %1338 = vmatpush2.msra.mxu0 0.0
    %1339 = vmatprep.subr.mxu0 0.0
    %1340 = vmatpush2.msra.mxu0 0.0
    %1341 = vmatprep.subr.mxu0 0.0
    %1342 = vmatpush2.msra.mxu0 0.0
    %1343 = vmatprep.subr.mxu0 0.0
    %1344 = vmatpush2.msra.mxu0 0.0
    %1345 = vmatprep.subr.mxu0 0.0
    %1346 = vmatpush2.msra.mxu0 0.0
    %1347 = vmatprep.subr.mxu0 0.0
    %1348 = vmatpush2.msra.mxu0 0.0
    %1349 = vmatprep.subr.mxu0 0.0
    %1350 = vmatpush2.msra.mxu0 0.0
    %1351 = vmatprep.subr.mxu0 0.0
    %1352 = vmatpush2.msra.mxu0 0.0
    %1353 = vmatprep.subr.mxu0 0.0
    %1354 = vmatpush2.msra.mxu0 0.0
    %1355 = vmatprep.subr.mxu0 0.0
    %1356 = vmatpush2.msra.mxu0 0.0
    %1357 = vmatprep.subr.mxu0 0.0
    %1358 = vmatpush2.msra.mxu0 0.0
    %1359 = vmatprep.subr.mxu0 0.0
    %1360 = vmatpush2.msra.mxu0 0.0
    %1361 = vmatprep.subr.mxu0 0.0
    %1362 = vmatpush2.msra.mxu0 0.0
    %1363 = vmatprep.subr.mxu0 0.0
    %1364 = vmatpush2.msra.mxu0 0.0
    %1365 = vmatprep.mubr.f32.mxu0 0.0
    %1366 = vmatmul.mubr.f32.gmra.mxu0 %v1262
    %v1367 = vpop.f32.mrf.mxu0
    %v1368 = vadd.f32 %v1299, %v1367
    %v1369 = vpop.f32.mrf.mxu0
    %1370 = vmatprep.mubr.f32.mxu0 0.0
    %1371 = vmatmul.mubr.f32.gmra.mxu0 %v1263
    %v1372 = vpop.f32.mrf.mxu0
    %v1373 = vadd.f32 %v1299, %v1372
    %v1374 = vpop.f32.mrf.mxu0
    %1375 = vmatprep.mubr.f32.mxu0 0.0
    %1376 = vmatmul.mubr.f32.gmra.mxu0 %v1264
    %v1377 = vpop.f32.mrf.mxu0
    %v1378 = vadd.f32 %v1299, %v1377
    %v1379 = vpop.f32.mrf.mxu0
    %1380 = vmatprep.mubr.f32.mxu0 0.0
    %1381 = vmatmul.mubr.f32.gmra.mxu0 %v1265
    %v1382 = vpop.f32.mrf.mxu0
    %v1383 = vadd.f32 %v1299, %v1382
    %v1384 = vpop.f32.mrf.mxu0
    %1385 = vmatprep.mubr.f32.mxu0 0.0
    %1386 = vmatmul.mubr.f32.gmra.mxu0 %v1266
    %v1387 = vpop.f32.mrf.mxu0
    %v1388 = vadd.f32 %v1299, %v1387
    %v1389 = vpop.f32.mrf.mxu0
    %1390 = vmatprep.mubr.f32.mxu0 0.0
    %1391 = vmatmul.mubr.f32.gmra.mxu0 %v1267
    %v1392 = vpop.f32.mrf.mxu0
    %v1393 = vadd.f32 %v1299, %v1392
    %v1394 = vpop.f32.mrf.mxu0
    %1395 = vmatprep.mubr.f32.mxu0 0.0
    %1396 = vmatmul.mubr.f32.gmra.mxu0 %v1268
    %v1397 = vpop.f32.mrf.mxu0
    %v1398 = vadd.f32 %v1299, %v1397
    %v1399 = vpop.f32.mrf.mxu0
    %1400 = vmatprep.mubr.f32.mxu0 0.0
    %1401 = vmatmul.mubr.f32.gmra.mxu0 %v1269
    %v1402 = vpop.f32.mrf.mxu0
    %v1403 = vadd.f32 %v1299, %v1402
    %v1404 = vpop.f32.mrf.mxu0
    %1405 = vmatprep.mubr.f32.mxu0 0.0
    %1406 = vmatmul.mubr.f32.gmra.mxu0 %v1270
    %v1407 = vpop.f32.mrf.mxu0
    %v1408 = vadd.f32 %v1299, %v1407
    %v1409 = vpop.f32.mrf.mxu0
    %1410 = vmatprep.mubr.f32.mxu0 0.0
    %1411 = vmatmul.mubr.f32.gmra.mxu0 %v1271
    %v1412 = vpop.f32.mrf.mxu0
    %v1413 = vadd.f32 %v1299, %v1412
    %v1414 = vpop.f32.mrf.mxu0
    %1415 = vmatprep.mubr.f32.mxu0 0.0
    %1416 = vmatmul.mubr.f32.gmra.mxu0 %v1272
    %v1417 = vpop.f32.mrf.mxu0
    %v1418 = vadd.f32 %v1299, %v1417
    %v1419 = vpop.f32.mrf.mxu0
    %1420 = vmatprep.mubr.f32.mxu0 0.0
    %1421 = vmatmul.mubr.f32.gmra.mxu0 %v1273
    %v1422 = vpop.f32.mrf.mxu0
    %v1423 = vadd.f32 %v1299, %v1422
    %v1424 = vpop.f32.mrf.mxu0
    %1425 = vmatprep.mubr.f32.mxu0 0.0
    %1426 = vmatmul.mubr.f32.gmra.mxu0 %v1274
    %v1427 = vpop.f32.mrf.mxu0
    %v1428 = vadd.f32 %v1299, %v1427
    %v1429 = vpop.f32.mrf.mxu0
    %1430 = vmatprep.mubr.f32.mxu0 0.0
    %1431 = vmatmul.mubr.f32.gmra.mxu0 %v1275
    %v1432 = vpop.f32.mrf.mxu0
    %v1433 = vadd.f32 %v1299, %v1432
    %v1434 = vpop.f32.mrf.mxu0
    %1435 = vmatprep.mubr.f32.mxu0 0.0
    %1436 = vmatmul.mubr.f32.gmra.mxu0 %v1276
    %v1437 = vpop.f32.mrf.mxu0
    %v1438 = vadd.f32 %v1299, %v1437
    %v1439 = vpop.f32.mrf.mxu0
    %1440 = vmatprep.mubr.f32.mxu0 0.0
    %1441 = vmatmul.mubr.f32.gmra.mxu0 %v1277
    %v1442 = vpop.f32.mrf.mxu0
    %v1443 = vadd.f32 %v1299, %v1442
    %v1444 = vpop.f32.mrf.mxu0
    %1445 = vdwg.mxu0
    %vm1446 = vcmask 130048
    %1447 = vst.msk [vmem:[#allocation13] sm:$0xff] %vm1446, %v1368
    %1448 = vst.msk [vmem:[#allocation13 + $0x8] sm:$0xff] %vm1446, %v1373
    %1449 = vst.msk [vmem:[#allocation13 + $0x10] sm:$0xff] %vm1446, %v1378
    %1450 = vst.msk [vmem:[#allocation13 + $0x18] sm:$0xff] %vm1446, %v1383
    %1451 = vst.msk [vmem:[#allocation13 + $0x20] sm:$0xff] %vm1446, %v1388
    %1452 = vst.msk [vmem:[#allocation13 + $0x28] sm:$0xff] %vm1446, %v1393
    %1453 = vst.msk [vmem:[#allocation13 + $0x30] sm:$0xff] %vm1446, %v1398
    %1454 = vst.msk [vmem:[#allocation13 + $0x38] sm:$0xff] %vm1446, %v1403
    %1455 = vst.msk [vmem:[#allocation13 + $0x40] sm:$0xff] %vm1446, %v1408
    %1456 = vst.msk [vmem:[#allocation13 + $0x48] sm:$0xff] %vm1446, %v1413
    %1457 = vst.msk [vmem:[#allocation13 + $0x50] sm:$0xff] %vm1446, %v1418
    %1458 = vst.msk [vmem:[#allocation13 + $0x58] sm:$0xff] %vm1446, %v1423
    %1459 = vst.msk [vmem:[#allocation13 + $0x60] sm:$0xff] %vm1446, %v1428
    %1460 = vst.msk [vmem:[#allocation13 + $0x68] sm:$0xff] %vm1446, %v1433
    %1461 = vst.msk [vmem:[#allocation13 + $0x70] sm:$0xff] %vm1446, %v1438
    %1462 = vst.msk [vmem:[#allocation13 + $0x78] sm:$0xff] %vm1446, %v1443
    // Predicated region
    $region78: #{tpu_custom_call.1} parent=1 // pred_check
      _
    $region79: #{tpu_custom_call.1} parent=1 // pred_check_branch
      %1464 = sbr.rel (0) target = $region81
    $region80: #{tpu_custom_call.1} parent=1 // pred_region
      %s1466 = ssub.s32 2048, 256
      %1467 = vsyncadd [#allocation4], %s1466
      %s1468 = sshll.u32 [#allocation13], 4
      %s1469 = int_to_ptr.vmem [resolvable:$true] %s1468
      %1474 = dma.vmem_to_hbm [thread:$0]  %s1469, 256, %s13, [#allocation4], 128, 128, 8
    $region81: #{tpu_custom_call.1} parent=1 // pred_fallthru
      _
    // Predicated region
    $region82: #{tpu_custom_call.1} parent=1 // pred_check
      _
    $region83: #{tpu_custom_call.1} parent=1 // pred_check_branch
      %1476 = sbr.rel (0) target = $region85
    $region84: #{tpu_custom_call.1} parent=1 // pred_region
      %1477 = dma.done [#allocation4], 2048
    $region85: #{tpu_custom_call.1} parent=1 // pred_fallthru
      _
    %1478 = vsyncpa [#allocation3], 1
    %1479 = vsyncpa [#allocation6], 1
    %1480 = vsyncpa [#allocation9], 1
    %1481 = vsyncpa [#allocation12], 1
    %1482 = vsyncpa [#allocation4], 1

</llo_original>
